<compile_context>
chip_gen: v7x
topology: tpu7x:2x2x1
jax: 0.10.0
libtpu: 0.0.40
codegen_flags: <defaults>
</compile_context>

<pallas_src>
import functools

import numpy as np
import jax
import jax.numpy as jnp
from jax import lax
from jax.experimental import pallas as pl
from jax.experimental.pallas import tpu as pltpu


# -----------------------------------------------------------------------------
# Pallas kernel: 1-D conv (+ bias, optional LeakyReLU) for one (batch, time-tile)
# grid cell.  Channels live on sublanes, time on lanes (lane-dense stores).
# -----------------------------------------------------------------------------
def _make_conv_kernel(S, K, C_in, C_out, Tt, qmax, slope):
    def kernel(xs_ref, w_ref, b_ref, o_ref):
        # xs_ref : (1, S*C_in, Lp)  bf16  phase-split padded input (resident per batch)
        # w_ref  : (K, C_out, C_in) bf16  per-tap weights (block-diagonal for groups>1)
        # b_ref  : (C_out, 1)       f32   bias
        # o_ref  : (1, C_out, Tt)   f32   output tile (time on lanes -> unmasked stores)
        t0 = pl.program_id(1) * Tt
        if Tt % 128 == 0:
            t0 = pl.multiple_of(t0, 128)

        acc = jnp.zeros((C_out, Tt), jnp.float32)
        for r in range(S):                                      # static: stride phases
            xw = xs_ref[0, r * C_in:(r + 1) * C_in, pl.ds(t0, Tt + qmax)]
            for k in range(r, K, S):                            # static: taps of phase r
                q = k // S
                xk = xw[:, q:q + Tt]                            # (C_in, Tt)  bf16
                wk = w_ref[k]                                   # (C_out, C_in) bf16
                if C_in == 1:
                    # degenerate contraction dim -> broadcast MAC on the VPU (f32)
                    acc = acc + wk.astype(jnp.float32) * xk.astype(jnp.float32)
                else:
                    acc = acc + jnp.dot(wk, xk,
                                        preferred_element_type=jnp.float32)
        y = acc + b_ref[...]
        if slope is not None:
            y = jnp.where(y >= 0.0, y, slope * y)               # LeakyReLU(0.2), f32
        o_ref[0, :, :] = y.astype(o_ref.dtype)

    return kernel


def _pick_time_tile(t_out):
    for t in (256, 128):
        if t_out % t == 0:
            return t
    return t_out


@functools.lru_cache(maxsize=None)
def _conv_call(B, C_in, C_out, K, S, Lp, T_out, slope):
    Tt = _pick_time_tile(T_out)
    qmax = (K - 1) // S
    n_t = T_out // Tt
    kernel = _make_conv_kernel(S, K, C_in, C_out, Tt, qmax, slope)
    return pl.pallas_call(
        kernel,
        out_shape=jax.ShapeDtypeStruct((B, C_out, T_out), jnp.float32),
        grid_spec=pltpu.PrefetchScalarGridSpec(
            num_scalar_prefetch=0,
            grid=(B, n_t),
            in_specs=[
                # whole phase-split input per batch element, resident across time tiles
                pl.BlockSpec((1, S * C_in, Lp), lambda b, i: (b, 0, 0)),
                pl.BlockSpec((K, C_out, C_in), lambda b, i: (0, 0, 0)),
                pl.BlockSpec((C_out, 1), lambda b, i: (0, 0)),
            ],
            out_specs=pl.BlockSpec((1, C_out, Tt), lambda b, i: (b, 0, i)),
        ),
        compiler_params=pltpu.CompilerParams(
            dimension_semantics=("parallel", "parallel")),
    )


def conv1d_pallas(x, layer):
    """x: (B, C_in, T) f32 -> (B, C_out, T_out) f32, PyTorch Conv1d semantics."""
    B, C_in, _ = x.shape
    assert C_in == layer.c_in
    K, S, P = layer.kernel_size, layer.stride, layer.padding
    if P > 0:
        mode = "reflect" if layer.pad_mode == "reflect" else "constant"
        x = jnp.pad(x, ((0, 0), (0, 0), (P, P)), mode=mode)
    Tp = x.shape[-1]
    T_out = (Tp - K) // S + 1
    qmax = (K - 1) // S
    Lp = T_out + qmax
    need = S * Lp
    if need > Tp:
        x = jnp.pad(x, ((0, 0), (0, 0), (0, need - Tp)))
    elif need < Tp:
        x = x[..., :need]
    # phase split: xs[b, r*C_in + c, u] == x_padded[b, c, u*S + r]
    xs = (x.reshape(B, C_in, Lp, S)
           .transpose(0, 3, 1, 2)
           .reshape(B, S * C_in, Lp)
           .astype(jnp.bfloat16))
    call = _conv_call(B, C_in, layer.c_out, K, S, Lp, T_out, layer.slope)
    return call(xs, layer.w_taps, layer.bias_col)


# -----------------------------------------------------------------------------
# Layer parameter containers (weight_norm folded into effective weights on host)
# -----------------------------------------------------------------------------
class ConvLayer:
    def __init__(self, rng, c_in, c_out, kernel_size, stride=1, padding=0,
                 groups=1, pad_mode="zeros", slope=0.2):
        assert c_in % groups == 0 and c_out % groups == 0
        self.c_in, self.c_out = int(c_in), int(c_out)
        self.kernel_size, self.stride = int(kernel_size), int(stride)
        self.padding, self.groups, self.pad_mode = int(padding), int(groups), pad_mode
        self.slope = None if slope is None else float(slope)

        cpg_in = c_in // groups
        cpg_out = c_out // groups
        # weight_norm (dim=0): effective weight w = g * v / ||v||, g initialised to 1
        v = rng.standard_normal((c_out, cpg_in, kernel_size))
        norm = np.sqrt((v * v).sum(axis=(1, 2), keepdims=True)) + 1e-12
        w = (v / norm).astype(np.float32)                    # (C_out, C_in/groups, K)
        b = (0.05 * rng.standard_normal((c_out,))).astype(np.float32)

        self.w_group = jnp.asarray(w)                        # for the lax reference
        self.bias = jnp.asarray(b)

        # grouped conv -> dense block-diagonal taps (identical math)
        dense = np.zeros((c_out, c_in, kernel_size), np.float32)
        for g in range(groups):
            dense[g * cpg_out:(g + 1) * cpg_out,
                  g * cpg_in:(g + 1) * cpg_in, :] = w[g * cpg_out:(g + 1) * cpg_out]
        self.w_taps = jnp.asarray(dense.transpose(2, 0, 1), dtype=jnp.bfloat16)
        self.bias_col = jnp.asarray(b.reshape(c_out, 1))


class AvgPoolAsConv:
    """AvgPool1d(4, stride=2, padding=1) expressed as an all-ones tap conv."""
    def __init__(self):
        self.c_in, self.c_out = 1, 1
        self.kernel_size, self.stride, self.padding = 4, 2, 1
        self.groups, self.pad_mode, self.slope = 1, "zeros", None
        self.w_taps = jnp.ones((4, 1, 1), dtype=jnp.bfloat16)
        self.bias_col = jnp.zeros((1, 1), dtype=jnp.float32)


def avg_pool_4_2_1(x, pool_layer):
    """AvgPool1d(4, 2, 1, count_include_pad=False) on (B, 1, T)."""
    B, C, T = x.shape
    assert C == 1
    sums = conv1d_pallas(x, pool_layer)          # zero-padded window sums
    L = sums.shape[-1]
    counts = np.array([sum(1 for k in range(4) if 0 <= 2 * t + k - 1 <= T - 1)
                       for t in range(L)], np.float32)
    return sums * jnp.asarray(1.0 / counts)[None, None, :]


# -----------------------------------------------------------------------------
# Discriminator wrappers (mirror the PyTorch module construction)
# -----------------------------------------------------------------------------
class NLayerDiscriminatorPallas:
    def __init__(self, rng, ndf, n_layers, downsampling_factor):
        layers = []
        layers.append(ConvLayer(rng, 1, ndf, 15, stride=1, padding=7,
                                groups=1, pad_mode="reflect", slope=0.2))
        nf = ndf
        stride = downsampling_factor
        nf_prev = nf
        for _ in range(1, n_layers + 1):
            nf_prev = nf
            nf = min(nf * stride, 1024)
            layers.append(ConvLayer(rng, nf_prev, nf, stride * 10 + 1, stride=stride,
                                    padding=stride * 5, groups=nf_prev // 4,
                                    pad_mode="zeros", slope=0.2))
        nf2 = min(nf * 2, 1024)
        # Faithful to the PyTorch code, which uses `nf_prev` as in_channels here.
        layers.append(ConvLayer(rng, nf_prev, nf2, 5, stride=1, padding=2,
                                groups=1, pad_mode="zeros", slope=0.2))
        layers.append(ConvLayer(rng, nf2, 1, 3, stride=1, padding=1,
                                groups=1, pad_mode="zeros", slope=None))

        prev = 1
        for l in layers:
            assert l.c_in == prev, (
                "inconsistent (ndf, n_layers, downsampling_factor) config "
                "(the original PyTorch construction has the same constraint)")
            prev = l.c_out
        self.layers = layers

    def __call__(self, x):
        feats = []
        for l in self.layers:
            x = conv1d_pallas(x, l)
            feats.append(x)
        return feats


class DiscriminatorPallas:
    def __init__(self, num_D, ndf, n_layers, downsampling_factor, seed=0):
        rng = np.random.default_rng(seed)
        self.discs = [NLayerDiscriminatorPallas(rng, ndf, n_layers, downsampling_factor)
                      for _ in range(num_D)]
        self.pool = AvgPoolAsConv()

    def __call__(self, x):
        results = []
        for d in self.discs:
            results.append(d(x))
            x = avg_pool_4_2_1(x, self.pool)     # downsample between scales
        return results


# -----------------------------------------------------------------------------
# Pure-JAX (f32, lax.conv) reference for correctness checking
# -----------------------------------------------------------------------------
def _ref_conv(x, layer):
    P = layer.padding
    if P > 0 and layer.pad_mode == "reflect":
        x = jnp.pad(x, ((0, 0), (0, 0), (P, P)), mode="reflect")
        pad = (0, 0)
    else:
        pad = (P, P)
    y = lax.conv_general_dilated(
        x, layer.w_group, window_strides=(layer.stride,), padding=[pad],
        dimension_numbers=("NCH", "OIH", "NCH"),
        feature_group_count=layer.groups)
    y = y + layer.bias[None, :, None]
    if layer.slope is not None:
        y = jnp.where(y >= 0.0, y, layer.slope * y)
    return y


def _ref_avg_pool(x):
    B, C, T = x.shape
    xp = jnp.pad(x, ((0, 0), (0, 0), (1, 1)))
    L = (T + 2 - 4) // 2 + 1
    s = sum(xp[..., k:k + 2 * L:2] for k in range(4))
    counts = np.array([sum(1 for k in range(4) if 0 <= 2 * t + k - 1 <= T - 1)
                       for t in range(L)], np.float32)
    return s / jnp.asarray(counts)[None, None, :]


def _reference_forward(model, x):
    results = []
    for d in model.discs:
        feats, h = [], x
        for l in d.layers:
            h = _ref_conv(h, l)
            feats.append(h)
        results.append(feats)
        x = _ref_avg_pool(x)
    return results


if __name__ == "__main__":
    # Small, self-consistent config: 2 scales, ndf=32, 2 grouped layers,
    # downsampling_factor=1 (the original construction needs the last grouped
    # layer's out-channels to equal nf_prev, which holds here).
    num_D, ndf, n_layers, downsampling_factor = 2, 32, 2, 1
    B, T = 2, 512

    model = DiscriminatorPallas(num_D, ndf, n_layers, downsampling_factor, seed=0)

    key = jax.random.PRNGKey(0)
    x = jax.random.normal(key, (B, 1, T), dtype=jnp.float32)

    out = model(x)
    out = jax.block_until_ready(out)

    ref = jax.block_until_ready(_reference_forward(model, x))

    assert len(out) == num_D
    assert np.asarray(out[0][0]).shape == (B, ndf, T)
    for di, (outs_p, outs_r) in enumerate(zip(out, ref)):
        assert len(outs_p) == n_layers + 3
        for li, (a, b) in enumerate(zip(outs_p, outs_r)):
            a, b = np.asarray(a), np.asarray(b)
            assert a.shape == b.shape, (di, li, a.shape, b.shape)
            scale = float(np.max(np.abs(b))) + 1e-6
            err = float(np.max(np.abs(a - b))) / scale
            assert err < 5e-2, f"disc {di} layer {li}: rel err {err:.4f}"

    print("KERNEL_OK")
</pallas_src>

<mosaic_0001>
module attributes {stable_mosaic.version = 11 : i64} {
  func.func @kernel(%arg0: i32, %arg1: i32, %arg2: memref<1x1x526xbf16, #tpu.memory_space<vmem>>, %arg3: memref<15x32x1xbf16, #tpu.memory_space<vmem>>, %arg4: memref<32x1xf32, #tpu.memory_space<vmem>>, %arg5: memref<1x32x256xf32, #tpu.memory_space<vmem>>) attributes {dimension_semantics = [#tpu.dimension_semantics<parallel>, #tpu.dimension_semantics<parallel>], iteration_bounds = array<i64: 2, 2>, scalar_prefetch = 0 : i64, scratch_operands = 0 : i64, tpu.core_type = #tpu.core_type<tc>, window_params = [{transform_indices = @transform_0, window_bounds = array<i64: 1, 1, 526>}, {pipeline_mode = #tpu.pipeline_mode<synchronous>, transform_indices = @transform_1, window_bounds = array<i64: 15, 32, 1>}, {pipeline_mode = #tpu.pipeline_mode<synchronous>, transform_indices = @transform_2, window_bounds = array<i64: 32, 1>}, {transform_indices = @transform_3, window_bounds = array<i64: 1, 32, 256>}]} {
    %c256_i32 = arith.constant 256 : i32
    %0 = arith.muli %arg1, %c256_i32 : i32
    %1 = tpu.assume_multiple %0, 128 : i32
    %cst = arith.constant 0.000000e+00 : f32
    %2 = vector.broadcast %cst : f32 to vector<32x256xf32>
    %c0 = arith.constant 0 : index
    %c0_0 = arith.constant 0 : index
    %3 = arith.index_cast %1 : i32 to index
    %4 = vector.load %arg2[%c0, %c0_0, %3] : memref<1x1x526xbf16, #tpu.memory_space<vmem>>, vector<1x1x270xbf16>
    %5 = vector.shape_cast %4 : vector<1x1x270xbf16> to vector<1x270xbf16>
    %6 = vector.extract_strided_slice %5 {offsets = [0, 0], sizes = [1, 256], strides = [1, 1]} : vector<1x270xbf16> to vector<1x256xbf16>
    %c0_1 = arith.constant 0 : index
    %c0_2 = arith.constant 0 : index
    %c0_3 = arith.constant 0 : index
    %7 = vector.load %arg3[%c0_1, %c0_2, %c0_3] : memref<15x32x1xbf16, #tpu.memory_space<vmem>>, vector<1x32x1xbf16>
    %8 = vector.shape_cast %7 : vector<1x32x1xbf16> to vector<32x1xbf16>
    %9 = arith.extf %8 : vector<32x1xbf16> to vector<32x1xf32>
    %10 = arith.extf %6 : vector<1x256xbf16> to vector<1x256xf32>
    %11 = vector.broadcast %9 : vector<32x1xf32> to vector<32x256xf32>
    %12 = vector.broadcast %10 : vector<1x256xf32> to vector<32x256xf32>
    %13 = arith.mulf %11, %12 : vector<32x256xf32>
    %14 = arith.addf %2, %13 : vector<32x256xf32>
    %15 = vector.extract_strided_slice %5 {offsets = [0, 1], sizes = [1, 256], strides = [1, 1]} : vector<1x270xbf16> to vector<1x256xbf16>
    %c1 = arith.constant 1 : index
    %c0_4 = arith.constant 0 : index
    %c0_5 = arith.constant 0 : index
    %16 = vector.load %arg3[%c1, %c0_4, %c0_5] : memref<15x32x1xbf16, #tpu.memory_space<vmem>>, vector<1x32x1xbf16>
    %17 = vector.shape_cast %16 : vector<1x32x1xbf16> to vector<32x1xbf16>
    %18 = arith.extf %17 : vector<32x1xbf16> to vector<32x1xf32>
    %19 = arith.extf %15 : vector<1x256xbf16> to vector<1x256xf32>
    %20 = vector.broadcast %18 : vector<32x1xf32> to vector<32x256xf32>
    %21 = vector.broadcast %19 : vector<1x256xf32> to vector<32x256xf32>
    %22 = arith.mulf %20, %21 : vector<32x256xf32>
    %23 = arith.addf %14, %22 : vector<32x256xf32>
    %24 = vector.extract_strided_slice %5 {offsets = [0, 2], sizes = [1, 256], strides = [1, 1]} : vector<1x270xbf16> to vector<1x256xbf16>
    %c2 = arith.constant 2 : index
    %c0_6 = arith.constant 0 : index
    %c0_7 = arith.constant 0 : index
    %25 = vector.load %arg3[%c2, %c0_6, %c0_7] : memref<15x32x1xbf16, #tpu.memory_space<vmem>>, vector<1x32x1xbf16>
    %26 = vector.shape_cast %25 : vector<1x32x1xbf16> to vector<32x1xbf16>
    %27 = arith.extf %26 : vector<32x1xbf16> to vector<32x1xf32>
    %28 = arith.extf %24 : vector<1x256xbf16> to vector<1x256xf32>
    %29 = vector.broadcast %27 : vector<32x1xf32> to vector<32x256xf32>
    %30 = vector.broadcast %28 : vector<1x256xf32> to vector<32x256xf32>
    %31 = arith.mulf %29, %30 : vector<32x256xf32>
    %32 = arith.addf %23, %31 : vector<32x256xf32>
    %33 = vector.extract_strided_slice %5 {offsets = [0, 3], sizes = [1, 256], strides = [1, 1]} : vector<1x270xbf16> to vector<1x256xbf16>
    %c3 = arith.constant 3 : index
    %c0_8 = arith.constant 0 : index
    %c0_9 = arith.constant 0 : index
    %34 = vector.load %arg3[%c3, %c0_8, %c0_9] : memref<15x32x1xbf16, #tpu.memory_space<vmem>>, vector<1x32x1xbf16>
    %35 = vector.shape_cast %34 : vector<1x32x1xbf16> to vector<32x1xbf16>
    %36 = arith.extf %35 : vector<32x1xbf16> to vector<32x1xf32>
    %37 = arith.extf %33 : vector<1x256xbf16> to vector<1x256xf32>
    %38 = vector.broadcast %36 : vector<32x1xf32> to vector<32x256xf32>
    %39 = vector.broadcast %37 : vector<1x256xf32> to vector<32x256xf32>
    %40 = arith.mulf %38, %39 : vector<32x256xf32>
    %41 = arith.addf %32, %40 : vector<32x256xf32>
    %42 = vector.extract_strided_slice %5 {offsets = [0, 4], sizes = [1, 256], strides = [1, 1]} : vector<1x270xbf16> to vector<1x256xbf16>
    %c4 = arith.constant 4 : index
    %c0_10 = arith.constant 0 : index
    %c0_11 = arith.constant 0 : index
    %43 = vector.load %arg3[%c4, %c0_10, %c0_11] : memref<15x32x1xbf16, #tpu.memory_space<vmem>>, vector<1x32x1xbf16>
    %44 = vector.shape_cast %43 : vector<1x32x1xbf16> to vector<32x1xbf16>
    %45 = arith.extf %44 : vector<32x1xbf16> to vector<32x1xf32>
    %46 = arith.extf %42 : vector<1x256xbf16> to vector<1x256xf32>
    %47 = vector.broadcast %45 : vector<32x1xf32> to vector<32x256xf32>
    %48 = vector.broadcast %46 : vector<1x256xf32> to vector<32x256xf32>
    %49 = arith.mulf %47, %48 : vector<32x256xf32>
    %50 = arith.addf %41, %49 : vector<32x256xf32>
    %51 = vector.extract_strided_slice %5 {offsets = [0, 5], sizes = [1, 256], strides = [1, 1]} : vector<1x270xbf16> to vector<1x256xbf16>
    %c5 = arith.constant 5 : index
    %c0_12 = arith.constant 0 : index
    %c0_13 = arith.constant 0 : index
    %52 = vector.load %arg3[%c5, %c0_12, %c0_13] : memref<15x32x1xbf16, #tpu.memory_space<vmem>>, vector<1x32x1xbf16>
    %53 = vector.shape_cast %52 : vector<1x32x1xbf16> to vector<32x1xbf16>
    %54 = arith.extf %53 : vector<32x1xbf16> to vector<32x1xf32>
    %55 = arith.extf %51 : vector<1x256xbf16> to vector<1x256xf32>
    %56 = vector.broadcast %54 : vector<32x1xf32> to vector<32x256xf32>
    %57 = vector.broadcast %55 : vector<1x256xf32> to vector<32x256xf32>
    %58 = arith.mulf %56, %57 : vector<32x256xf32>
    %59 = arith.addf %50, %58 : vector<32x256xf32>
    %60 = vector.extract_strided_slice %5 {offsets = [0, 6], sizes = [1, 256], strides = [1, 1]} : vector<1x270xbf16> to vector<1x256xbf16>
    %c6 = arith.constant 6 : index
    %c0_14 = arith.constant 0 : index
    %c0_15 = arith.constant 0 : index
    %61 = vector.load %arg3[%c6, %c0_14, %c0_15] : memref<15x32x1xbf16, #tpu.memory_space<vmem>>, vector<1x32x1xbf16>
    %62 = vector.shape_cast %61 : vector<1x32x1xbf16> to vector<32x1xbf16>
    %63 = arith.extf %62 : vector<32x1xbf16> to vector<32x1xf32>
    %64 = arith.extf %60 : vector<1x256xbf16> to vector<1x256xf32>
    %65 = vector.broadcast %63 : vector<32x1xf32> to vector<32x256xf32>
    %66 = vector.broadcast %64 : vector<1x256xf32> to vector<32x256xf32>
    %67 = arith.mulf %65, %66 : vector<32x256xf32>
    %68 = arith.addf %59, %67 : vector<32x256xf32>
    %69 = vector.extract_strided_slice %5 {offsets = [0, 7], sizes = [1, 256], strides = [1, 1]} : vector<1x270xbf16> to vector<1x256xbf16>
    %c7 = arith.constant 7 : index
    %c0_16 = arith.constant 0 : index
    %c0_17 = arith.constant 0 : index
    %70 = vector.load %arg3[%c7, %c0_16, %c0_17] : memref<15x32x1xbf16, #tpu.memory_space<vmem>>, vector<1x32x1xbf16>
    %71 = vector.shape_cast %70 : vector<1x32x1xbf16> to vector<32x1xbf16>
    %72 = arith.extf %71 : vector<32x1xbf16> to vector<32x1xf32>
    %73 = arith.extf %69 : vector<1x256xbf16> to vector<1x256xf32>
    %74 = vector.broadcast %72 : vector<32x1xf32> to vector<32x256xf32>
    %75 = vector.broadcast %73 : vector<1x256xf32> to vector<32x256xf32>
    %76 = arith.mulf %74, %75 : vector<32x256xf32>
    %77 = arith.addf %68, %76 : vector<32x256xf32>
    %78 = vector.extract_strided_slice %5 {offsets = [0, 8], sizes = [1, 256], strides = [1, 1]} : vector<1x270xbf16> to vector<1x256xbf16>
    %c8 = arith.constant 8 : index
    %c0_18 = arith.constant 0 : index
    %c0_19 = arith.constant 0 : index
    %79 = vector.load %arg3[%c8, %c0_18, %c0_19] : memref<15x32x1xbf16, #tpu.memory_space<vmem>>, vector<1x32x1xbf16>
    %80 = vector.shape_cast %79 : vector<1x32x1xbf16> to vector<32x1xbf16>
    %81 = arith.extf %80 : vector<32x1xbf16> to vector<32x1xf32>
    %82 = arith.extf %78 : vector<1x256xbf16> to vector<1x256xf32>
    %83 = vector.broadcast %81 : vector<32x1xf32> to vector<32x256xf32>
    %84 = vector.broadcast %82 : vector<1x256xf32> to vector<32x256xf32>
    %85 = arith.mulf %83, %84 : vector<32x256xf32>
    %86 = arith.addf %77, %85 : vector<32x256xf32>
    %87 = vector.extract_strided_slice %5 {offsets = [0, 9], sizes = [1, 256], strides = [1, 1]} : vector<1x270xbf16> to vector<1x256xbf16>
    %c9 = arith.constant 9 : index
    %c0_20 = arith.constant 0 : index
    %c0_21 = arith.constant 0 : index
    %88 = vector.load %arg3[%c9, %c0_20, %c0_21] : memref<15x32x1xbf16, #tpu.memory_space<vmem>>, vector<1x32x1xbf16>
    %89 = vector.shape_cast %88 : vector<1x32x1xbf16> to vector<32x1xbf16>
    %90 = arith.extf %89 : vector<32x1xbf16> to vector<32x1xf32>
    %91 = arith.extf %87 : vector<1x256xbf16> to vector<1x256xf32>
    %92 = vector.broadcast %90 : vector<32x1xf32> to vector<32x256xf32>
    %93 = vector.broadcast %91 : vector<1x256xf32> to vector<32x256xf32>
    %94 = arith.mulf %92, %93 : vector<32x256xf32>
    %95 = arith.addf %86, %94 : vector<32x256xf32>
    %96 = vector.extract_strided_slice %5 {offsets = [0, 10], sizes = [1, 256], strides = [1, 1]} : vector<1x270xbf16> to vector<1x256xbf16>
    %c10 = arith.constant 10 : index
    %c0_22 = arith.constant 0 : index
    %c0_23 = arith.constant 0 : index
    %97 = vector.load %arg3[%c10, %c0_22, %c0_23] : memref<15x32x1xbf16, #tpu.memory_space<vmem>>, vector<1x32x1xbf16>
    %98 = vector.shape_cast %97 : vector<1x32x1xbf16> to vector<32x1xbf16>
    %99 = arith.extf %98 : vector<32x1xbf16> to vector<32x1xf32>
    %100 = arith.extf %96 : vector<1x256xbf16> to vector<1x256xf32>
    %101 = vector.broadcast %99 : vector<32x1xf32> to vector<32x256xf32>
    %102 = vector.broadcast %100 : vector<1x256xf32> to vector<32x256xf32>
    %103 = arith.mulf %101, %102 : vector<32x256xf32>
    %104 = arith.addf %95, %103 : vector<32x256xf32>
    %105 = vector.extract_strided_slice %5 {offsets = [0, 11], sizes = [1, 256], strides = [1, 1]} : vector<1x270xbf16> to vector<1x256xbf16>
    %c11 = arith.constant 11 : index
    %c0_24 = arith.constant 0 : index
    %c0_25 = arith.constant 0 : index
    %106 = vector.load %arg3[%c11, %c0_24, %c0_25] : memref<15x32x1xbf16, #tpu.memory_space<vmem>>, vector<1x32x1xbf16>
    %107 = vector.shape_cast %106 : vector<1x32x1xbf16> to vector<32x1xbf16>
    %108 = arith.extf %107 : vector<32x1xbf16> to vector<32x1xf32>
    %109 = arith.extf %105 : vector<1x256xbf16> to vector<1x256xf32>
    %110 = vector.broadcast %108 : vector<32x1xf32> to vector<32x256xf32>
    %111 = vector.broadcast %109 : vector<1x256xf32> to vector<32x256xf32>
    %112 = arith.mulf %110, %111 : vector<32x256xf32>
    %113 = arith.addf %104, %112 : vector<32x256xf32>
    %114 = vector.extract_strided_slice %5 {offsets = [0, 12], sizes = [1, 256], strides = [1, 1]} : vector<1x270xbf16> to vector<1x256xbf16>
    %c12 = arith.constant 12 : index
    %c0_26 = arith.constant 0 : index
    %c0_27 = arith.constant 0 : index
    %115 = vector.load %arg3[%c12, %c0_26, %c0_27] : memref<15x32x1xbf16, #tpu.memory_space<vmem>>, vector<1x32x1xbf16>
    %116 = vector.shape_cast %115 : vector<1x32x1xbf16> to vector<32x1xbf16>
    %117 = arith.extf %116 : vector<32x1xbf16> to vector<32x1xf32>
    %118 = arith.extf %114 : vector<1x256xbf16> to vector<1x256xf32>
    %119 = vector.broadcast %117 : vector<32x1xf32> to vector<32x256xf32>
    %120 = vector.broadcast %118 : vector<1x256xf32> to vector<32x256xf32>
    %121 = arith.mulf %119, %120 : vector<32x256xf32>
    %122 = arith.addf %113, %121 : vector<32x256xf32>
    %123 = vector.extract_strided_slice %5 {offsets = [0, 13], sizes = [1, 256], strides = [1, 1]} : vector<1x270xbf16> to vector<1x256xbf16>
    %c13 = arith.constant 13 : index
    %c0_28 = arith.constant 0 : index
    %c0_29 = arith.constant 0 : index
    %124 = vector.load %arg3[%c13, %c0_28, %c0_29] : memref<15x32x1xbf16, #tpu.memory_space<vmem>>, vector<1x32x1xbf16>
    %125 = vector.shape_cast %124 : vector<1x32x1xbf16> to vector<32x1xbf16>
    %126 = arith.extf %125 : vector<32x1xbf16> to vector<32x1xf32>
    %127 = arith.extf %123 : vector<1x256xbf16> to vector<1x256xf32>
    %128 = vector.broadcast %126 : vector<32x1xf32> to vector<32x256xf32>
    %129 = vector.broadcast %127 : vector<1x256xf32> to vector<32x256xf32>
    %130 = arith.mulf %128, %129 : vector<32x256xf32>
    %131 = arith.addf %122, %130 : vector<32x256xf32>
    %132 = vector.extract_strided_slice %5 {offsets = [0, 14], sizes = [1, 256], strides = [1, 1]} : vector<1x270xbf16> to vector<1x256xbf16>
    %c14 = arith.constant 14 : index
    %c0_30 = arith.constant 0 : index
    %c0_31 = arith.constant 0 : index
    %133 = vector.load %arg3[%c14, %c0_30, %c0_31] : memref<15x32x1xbf16, #tpu.memory_space<vmem>>, vector<1x32x1xbf16>
    %134 = vector.shape_cast %133 : vector<1x32x1xbf16> to vector<32x1xbf16>
    %135 = arith.extf %134 : vector<32x1xbf16> to vector<32x1xf32>
    %136 = arith.extf %132 : vector<1x256xbf16> to vector<1x256xf32>
    %137 = vector.broadcast %135 : vector<32x1xf32> to vector<32x256xf32>
    %138 = vector.broadcast %136 : vector<1x256xf32> to vector<32x256xf32>
    %139 = arith.mulf %137, %138 : vector<32x256xf32>
    %140 = arith.addf %131, %139 : vector<32x256xf32>
    %c0_32 = arith.constant 0 : index
    %c0_33 = arith.constant 0 : index
    %141 = vector.load %arg4[%c0_32, %c0_33] : memref<32x1xf32, #tpu.memory_space<vmem>>, vector<32x1xf32>
    %142 = vector.broadcast %141 : vector<32x1xf32> to vector<32x256xf32>
    %143 = arith.addf %140, %142 : vector<32x256xf32>
    %cst_34 = arith.constant 0.000000e+00 : f32
    %144 = vector.broadcast %cst_34 : f32 to vector<32x256xf32>
    %145 = arith.cmpf oge, %143, %144 : vector<32x256xf32>
    %cst_35 = arith.constant 2.000000e-01 : f32
    %146 = vector.broadcast %cst_35 : f32 to vector<32x256xf32>
    %147 = arith.mulf %146, %143 : vector<32x256xf32>
    %148 = arith.select %145, %143, %147 : vector<32x256xi1>, vector<32x256xf32>
    %c0_36 = arith.constant 0 : index
    %c0_37 = arith.constant 0 : index
    %c0_38 = arith.constant 0 : index
    %149 = vector.load %arg5[%c0_36, %c0_37, %c0_38] : memref<1x32x256xf32, #tpu.memory_space<vmem>>, vector<1x32x256xf32>
    %150 = vector.shape_cast %149 : vector<1x32x256xf32> to vector<32x256xf32>
    %151 = vector.shape_cast %148 : vector<32x256xf32> to vector<1x32x256xf32>
    tpu.vector_store %arg5[%c0_36, %c0_37, %c0_38], %151 {strides = array<i32>} : memref<1x32x256xf32, #tpu.memory_space<vmem>>, vector<1x32x256xf32>,
    return
  }
  func.func @transform_0(%arg0: i32, %arg1: i32) -> (i32, i32, i32) {
    %c0_i32 = arith.constant 0 : i32
    %c0_i32_0 = arith.constant 0 : i32
    %c0_i32_1 = arith.constant 0 : i32
    return %arg0, %c0_i32, %c0_i32_0 : i32, i32, i32
  }
  func.func @transform_1(%arg0: i32, %arg1: i32) -> (i32, i32, i32) {
    %c0_i32 = arith.constant 0 : i32
    %c0_i32_0 = arith.constant 0 : i32
    %c0_i32_1 = arith.constant 0 : i32
    %c0_i32_2 = arith.constant 0 : i32
    return %c0_i32, %c0_i32_0, %c0_i32_1 : i32, i32, i32
  }
  func.func @transform_2(%arg0: i32, %arg1: i32) -> (i32, i32) {
    %c0_i32 = arith.constant 0 : i32
    %c0_i32_0 = arith.constant 0 : i32
    %c0_i32_1 = arith.constant 0 : i32
    return %c0_i32, %c0_i32_0 : i32, i32
  }
  func.func @transform_3(%arg0: i32, %arg1: i32) -> (i32, i32, i32) {
    %c0_i32 = arith.constant 0 : i32
    %c0_i32_0 = arith.constant 0 : i32
    return %arg0, %c0_i32, %arg1 : i32, i32, i32
  }
}

</mosaic_0001>

<llo_original>
// kernel: tpu_custom_call.1
$region0: #{tpu_custom_call.1}
  #allocation0 [shape = 'u32[]', space=smem, size = 0x4, offset = 0x4, fixed_abs, tag = 'smem constant byte address 0x4 - core index']
  #allocation1 [shape = 'u32[144,128]{1,0:T(1,128)}', space=vmem, size = 0x12000, scoped, tag = 'internal scratch']
  %s0 = inlined_call_operand.vmem [shape: bf16[2,1,526], index: 0, kind: input, shape index: {}]
  %s1 = inlined_call_operand.vmem [shape: bf16[15,32,1], index: 1, kind: input, shape index: {}]
  %s2 = inlined_call_operand.vmem [shape: f32[32,1], index: 2, kind: input, shape index: {}]
  %s3 = inlined_call_operand.hbm [shape: f32[2,32,512], index: 3, kind: output, shape index: {}]
  %s4 = sld [smem:[#allocation0]]
  $region45: #{tpu_custom_call.1} parent=0
    _
  %s6 = ssub.s32 1, %s4
  %s7 = scalar_select 0, %s6, %s4
  $region1: #{tpu_custom_call.1} parent=0
    #allocation2 [shape = 'u8[65536]{0}', space=vmem, size = 0x10000, scoped, tag = 'output window, operand 0']
    #allocation3 [shape = 's32[2]{0}', space=sflag, size = 0x8, scoped, tag = 'scoped memory for tpu_custom_call.1']
    %8 = vsyncpa [#allocation3], 0
    %s9 = scalar_lea.sflag [#allocation3], 1
    %10 = vsyncpa %s9, 0
    loop: start=0, step=1, limit=6
    $region2: #{tpu_custom_call.1} parent=1 // loop_pre_header
      _
    $region3: #{tpu_custom_call.1} parent=1 // loop_header
      %s12 = sphi 0, %s16
      %p13 = scmp.ge.s32.totalorder %s12, 6
      %s19 = sphi 0, %s31
      %s20 = sphi 0, %s27
      %s21 = sphi 0, %s19
      %s22 = sphi 0, %s20
      %s23 = sphi 0, %s21
      %s24 = sphi 0, %s22
      %s34 = sphi 0, %s36
      %s37 = sphi 0, %s34
      %s38 = sphi 0, %s37
      %s54 = sphi 0, %s38
      %s58 = sphi 0, %s58
      %s60 = sphi 0, %s58
      %s61 = sphi 0, %s60
      %s75 = sphi 0, %s61
      %s79 = sphi 0, %s79
      %s81 = sphi 0, %s79
      %s82 = sphi 0, %s81
      %s96 = sphi 0, %s82
      %s104 = sphi 0, %s106
      %s107 = sphi 0, %s104
      %s108 = sphi 0, %s107
      %s124 = sphi 0, %s108
    $region4: #{tpu_custom_call.1} parent=1 // loop_header_branch
      %15 = sbr.rel (%p13) target = $region8
    $region5: #{tpu_custom_call.1} parent=1 // loop_body
      %s17 = ssub.s32 %s12, 1
      %s18 = ssub.s32 %s12, 2
      %s25 = sadd.s32 1, %s20
      %p26 = scmp.ge.s32.totalorder %s25, 2
      %s27 = scalar_select %p26, 0, %s25
      %s28 = sadd.s32 1, %s19
      %s29 = scalar_select %p26, %s28, %s19
      %p30 = scmp.ge.s32.totalorder %s29, 2
      %s31 = scalar_select %p30, 0, %s29
      %s32 = ssub.s32 %s19, %s31
      %p33 = scmp.eq.s32.totalorder %s32, 0
      %s35 = sadd.s32 %s34, 1
      %s36 = scalar_select %p33, %s34, %s35
      %p39 = pneg %p33
      %p40 = scmp.eq.s32.totalorder %s12, 3
      %p41 = por %p39, %p40
      %p42 = scmp.ne.s32.totalorder %s34, %s37
      %p43 = scmp.eq.s32.totalorder %s12, 0
      %p44 = por %p42, %p43
      %p45 = scmp.ne.s32.totalorder %s34, %s37
      %p46 = scmp.eq.s32.totalorder %s17, 3
      %p47 = por %p45, %p46
      %p48 = scmp.ne.s32.totalorder %s37, %s38
      %p49 = scmp.eq.s32.totalorder %s17, 0
      %p50 = por %p48, %p49
      %p51 = scmp.ne.s32.totalorder %s37, %s38
      %p52 = scmp.eq.s32.totalorder %s18, 3
      %p53 = por %p51, %p52
      %p55 = scmp.ne.s32.totalorder %s38, %s54
      %p56 = scmp.eq.s32.totalorder %s18, 0
      %p57 = por %p55, %p56
      %s59 = sadd.s32 %s58, 1
      %p62 = scmp.eq.s32.totalorder %s12, 3
      %p63 = scmp.ne.s32.totalorder %s58, %s60
      %p64 = scmp.eq.s32.totalorder %s12, 0
      %p65 = por %p63, %p64
      %p66 = scmp.ne.s32.totalorder %s58, %s60
      %p67 = scmp.eq.s32.totalorder %s17, 3
      %p68 = por %p66, %p67
      %p69 = scmp.ne.s32.totalorder %s60, %s61
      %p70 = scmp.eq.s32.totalorder %s17, 0
      %p71 = por %p69, %p70
      %p72 = scmp.ne.s32.totalorder %s60, %s61
      %p73 = scmp.eq.s32.totalorder %s18, 3
      %p74 = por %p72, %p73
      %p76 = scmp.ne.s32.totalorder %s61, %s75
      %p77 = scmp.eq.s32.totalorder %s18, 0
      %p78 = por %p76, %p77
      %s80 = sadd.s32 %s79, 1
      %p83 = scmp.eq.s32.totalorder %s12, 3
      %p84 = scmp.ne.s32.totalorder %s79, %s81
      %p85 = scmp.eq.s32.totalorder %s12, 0
      %p86 = por %p84, %p85
      %p87 = scmp.ne.s32.totalorder %s79, %s81
      %p88 = scmp.eq.s32.totalorder %s17, 3
      %p89 = por %p87, %p88
      %p90 = scmp.ne.s32.totalorder %s81, %s82
      %p91 = scmp.eq.s32.totalorder %s17, 0
      %p92 = por %p90, %p91
      %p93 = scmp.ne.s32.totalorder %s81, %s82
      %p94 = scmp.eq.s32.totalorder %s18, 3
      %p95 = por %p93, %p94
      %p97 = scmp.ne.s32.totalorder %s82, %s96
      %p98 = scmp.eq.s32.totalorder %s18, 0
      %p99 = por %p97, %p98
      %s100 = ssub.s32 %s19, %s31
      %s101 = ssub.s32 %s20, %s27
      %s102 = sor.u32 %s100, %s101
      %p103 = scmp.eq.s32.totalorder %s102, 0
      %s105 = sadd.s32 %s104, 1
      %s106 = scalar_select %p103, %s104, %s105
      %p109 = pneg %p103
      %p110 = scmp.eq.s32.totalorder %s12, 3
      %p111 = por %p109, %p110
      %p112 = scmp.ne.s32.totalorder %s104, %s107
      %p113 = scmp.eq.s32.totalorder %s12, 0
      %p114 = por %p112, %p113
      %p115 = scmp.ne.s32.totalorder %s104, %s107
      %p116 = scmp.eq.s32.totalorder %s17, 3
      %p117 = por %p115, %p116
      %p118 = scmp.ne.s32.totalorder %s107, %s108
      %p119 = scmp.eq.s32.totalorder %s17, 0
      %p120 = por %p118, %p119
      %p121 = scmp.ne.s32.totalorder %s107, %s108
      %p122 = scmp.eq.s32.totalorder %s18, 3
      %p123 = por %p121, %p122
      %p125 = scmp.ne.s32.totalorder %s108, %s124
      %p126 = scmp.eq.s32.totalorder %s18, 0
      %p127 = por %p125, %p126
      %p128 = scmp.le.s32.totalorder 1, %s12
      %p129 = scmp.lt.s32.totalorder %s12, 5
      %p130 = pnand %p128, %p129
      %p131 = pneg %p130
      // Predicated region
      $region9: #{tpu_custom_call.1} parent=5 // pred_check
        _
      $region10: #{tpu_custom_call.1} parent=5 // pred_check_branch
        %133 = sbr.rel (%p130) target = $region12
      $region11: #{tpu_custom_call.1} parent=5 // pred_region
        %s134 = ssub.s32 %s12, 1
        // Predicated region
        $region13: #{tpu_custom_call.1} parent=11 // pred_check
          %p135 = pneg %p71
        $region14: #{tpu_custom_call.1} parent=11 // pred_check_branch
          %137 = sbr.rel (%p135) target = $region16
        $region15: #{tpu_custom_call.1} parent=11 // pred_region
          _
        $region16: #{tpu_custom_call.1} parent=11 // pred_fallthru
          _
        // Predicated region
        $region17: #{tpu_custom_call.1} parent=11 // pred_check
          %p138 = pneg %p92
        $region18: #{tpu_custom_call.1} parent=11 // pred_check_branch
          %140 = sbr.rel (%p138) target = $region20
        $region19: #{tpu_custom_call.1} parent=11 // pred_region
          _
        $region20: #{tpu_custom_call.1} parent=11 // pred_fallthru
          _
      $region12: #{tpu_custom_call.1} parent=5 // pred_fallthru
        _
      %p141 = scmp.lt.s32.totalorder %s12, 4
      // Predicated region
      $region21: #{tpu_custom_call.1} parent=5 // pred_check
        %p142 = pneg %p141
      $region22: #{tpu_custom_call.1} parent=5 // pred_check_branch
        %144 = sbr.rel (%p142) target = $region24
      $region23: #{tpu_custom_call.1} parent=5 // pred_region
        // Predicated region
        $region25: #{tpu_custom_call.1} parent=23 // pred_check
          %p145 = pneg %p44
        $region26: #{tpu_custom_call.1} parent=23 // pred_check_branch
          %147 = sbr.rel (%p145) target = $region28
        $region27: #{tpu_custom_call.1} parent=23 // pred_region
          %p148 = scmp.lt.s32.totalorder %s19, 1
          %s149 = scalar_select %p148, %s19, 1
          %s150 = smul.addr %s149, 5
          %s151 = scalar_lea.vmem %s0, %s150
        $region28: #{tpu_custom_call.1} parent=23 // pred_fallthru
          _
      $region24: #{tpu_custom_call.1} parent=5 // pred_fallthru
        _
      %p152 = scmp.le.s32.totalorder 1, %s12
      %p153 = scmp.lt.s32.totalorder %s12, 5
      %p154 = pnand %p152, %p153
      %p155 = pneg %p154
      // Predicated region
      $region29: #{tpu_custom_call.1} parent=5 // pred_check
        _
      $region30: #{tpu_custom_call.1} parent=5 // pred_check_branch
        %157 = sbr.rel (%p154) target = $region32
      $region31: #{tpu_custom_call.1} parent=5 // pred_region
        %s158 = ssub.s32 %s12, 1
        %p159 = scmp.lt.s32.totalorder %s21, 1
        %s160 = scalar_select %p159, %s21, 1
        %s161 = smul.addr %s160, 5
        %s162 = scalar_lea.vmem %s0, %s161
        %p163 = pneg %p50
        %p164 = pneg %p47
        %p165 = pneg %p71
        %p166 = pneg %p68
        %p167 = pneg %p92
        %p168 = pneg %p89
        %p169 = pneg %p120
        %p170 = pneg %p117
        %s171 = sand.u32 %s107, 1
        %s172 = scalar_lea.sflag [#allocation3], %s171
        %s173 = sand.u32 %s107, 1
        %s174 = smul.addr %s173, 64
        %s175 = scalar_lea.vmem [#allocation2], %s174
        %p176 = scmp.lt.s32.totalorder %s21, 1
        %s177 = scalar_select %p176, %s21, 1
        %s178 = smul.addr %s177, 5
        %s179 = scalar_lea.vmem %s0, %s178
        %s180 = smul.u32 2, %s22
        %s181 = smul.u32 %s22, 256
        %s182 = sshra.s32 %s181, 7
        %s183 = sand.u32 %s181, 127
        %s184 = scalar_lea.vmem %s179, %s182
        %v185 = vld [vmem:[%s184] sm:$0x7]
        %v186 = vld [vmem:[%s1] sm:$0xf]
        %v187 = vld [vmem:[%s1 + $0x4] sm:$0xf]
        %v188 = vld [vmem:[%s1 + $0x8] sm:$0xf]
        %v189 = vld [vmem:[%s1 + $0xc] sm:$0xf]
        %v190 = vunpack.c.l.bf16 %v186
        %v191 = vunpack.c.l.bf16 %v187
        %v192 = vunpack.c.l.bf16 %v188
        %v193 = vunpack.c.l.bf16 %v189
        %v194 = vunpack.c.l.bf16 %v185
        %196 = vset.pattern.permute.xlu0 0
        %197 = vperm.xlu0 %196, %v190
        %v198 = vpop.permute.xlu0 %197
        %201 = vset.pattern.permute.xlu0 0
        %202 = vperm.xlu0 %201, %v191
        %v203 = vpop.permute.xlu0 %202
        %206 = vset.pattern.permute.xlu0 0
        %207 = vperm.xlu0 %206, %v192
        %v208 = vpop.permute.xlu0 %207
        %211 = vset.pattern.permute.xlu0 0
        %212 = vperm.xlu0 %211, %v193
        %v213 = vpop.permute.xlu0 %212
        %v216 = vlaneseq
        %v217 = vshrl.u32 %v216, 7
        %v218 = vsub.s32 0, %v217
        %v219 = vrot.slane %v194, %v218
        %v220 = vlaneseq
        %v221 = vshrl.u32 %v220, 7
        %v222 = vsub.s32 2, %v221
        %v223 = vrot.slane %v194, %v222
        %v226 = vlaneseq
        %v227 = vshrl.u32 %v226, 7
        %v228 = vsub.s32 0, %v227
        %v229 = vrot.slane %v219, %v228
        %v230 = vlaneseq
        %v231 = vshrl.u32 %v230, 7
        %v232 = vsub.s32 0, %v231
        %v233 = vrot.slane %v223, %v232
        %v234 = vmul.f32 %v198, %v229
        %v235 = vmul.f32 %v198, %v233
        %v236 = vmul.f32 %v203, %v229
        %v237 = vmul.f32 %v203, %v233
        %v238 = vmul.f32 %v208, %v229
        %v239 = vmul.f32 %v208, %v233
        %v240 = vmul.f32 %v213, %v229
        %v241 = vmul.f32 %v213, %v233
        %v242 = vadd.f32 %v234, 0.0
        %v243 = vadd.f32 %v235, 0.0
        %v244 = vadd.f32 %v236, 0.0
        %v245 = vadd.f32 %v237, 0.0
        %v246 = vadd.f32 %v238, 0.0
        %v247 = vadd.f32 %v239, 0.0
        %v248 = vadd.f32 %v240, 0.0
        %v249 = vadd.f32 %v241, 0.0
        %s250 = scalar_lea.vmem %s1, 16
        %v251 = vld [vmem:[%s250] sm:$0xf]
        %v252 = vld [vmem:[%s250 + $0x4] sm:$0xf]
        %v253 = vld [vmem:[%s250 + $0x8] sm:$0xf]
        %v254 = vld [vmem:[%s250 + $0xc] sm:$0xf]
        %v255 = vunpack.c.l.bf16 %v251
        %v256 = vunpack.c.l.bf16 %v252
        %v257 = vunpack.c.l.bf16 %v253
        %v258 = vunpack.c.l.bf16 %v254
        %260 = vset.pattern.permute.xlu0 0
        %261 = vperm.xlu0 %260, %v255
        %v262 = vpop.permute.xlu0 %261
        %265 = vset.pattern.permute.xlu0 0
        %266 = vperm.xlu0 %265, %v256
        %v267 = vpop.permute.xlu0 %266
        %270 = vset.pattern.permute.xlu0 0
        %271 = vperm.xlu0 %270, %v257
        %v272 = vpop.permute.xlu0 %271
        %275 = vset.pattern.permute.xlu0 0
        %276 = vperm.xlu0 %275, %v258
        %v277 = vpop.permute.xlu0 %276
        %v279 = vlaneseq
        %v280 = vshrl.u32 %v279, 7
        %v281 = vsub.s32 4, %v280
        %v282 = vrot.slane %v194, %v281
        %v284 = vlaneseq
        %v285 = vshrl.u32 %v284, 7
        %v286 = vsub.s32 0, %v285
        %v287 = vrot.slane %v282, %v286
        %v288 = vmul.f32 %v262, %v229
        %v289 = vmul.f32 %v262, %v233
        %v290 = vmul.f32 %v262, %v287
        %v291 = vmul.f32 %v267, %v229
        %v292 = vmul.f32 %v267, %v233
        %v293 = vmul.f32 %v267, %v287
        %v294 = vmul.f32 %v272, %v229
        %v295 = vmul.f32 %v272, %v233
        %v296 = vmul.f32 %v272, %v287
        %v297 = vmul.f32 %v277, %v229
        %v298 = vmul.f32 %v277, %v233
        %v299 = vmul.f32 %v277, %v287
        %312 = vrot.lane.b32.xlu0 %v288, 127
        %v313 = vpop.permute.xlu0 %312
        %314 = vrot.lane.b32.xlu0 %v289, 127
        %v315 = vpop.permute.xlu0 %314
        %316 = vrot.lane.b32.xlu0 %v290, 127
        %v317 = vpop.permute.xlu0 %316
        %318 = vrot.lane.b32.xlu0 %v291, 127
        %v319 = vpop.permute.xlu0 %318
        %320 = vrot.lane.b32.xlu0 %v292, 127
        %v321 = vpop.permute.xlu0 %320
        %322 = vrot.lane.b32.xlu0 %v293, 127
        %v323 = vpop.permute.xlu0 %322
        %324 = vrot.lane.b32.xlu0 %v294, 127
        %v325 = vpop.permute.xlu0 %324
        %326 = vrot.lane.b32.xlu0 %v295, 127
        %v327 = vpop.permute.xlu0 %326
        %328 = vrot.lane.b32.xlu0 %v296, 127
        %v329 = vpop.permute.xlu0 %328
        %330 = vrot.lane.b32.xlu0 %v297, 127
        %v331 = vpop.permute.xlu0 %330
        %332 = vrot.lane.b32.xlu0 %v298, 127
        %v333 = vpop.permute.xlu0 %332
        %334 = vrot.lane.b32.xlu0 %v299, 127
        %v335 = vpop.permute.xlu0 %334
        %vm336 = vcmask 1039360
        %v337 = vsel %vm336, %v313, %v315
        %v338 = vsel %vm336, %v315, %v317
        %v339 = vsel %vm336, %v319, %v321
        %v340 = vsel %vm336, %v321, %v323
        %v341 = vsel %vm336, %v325, %v327
        %v342 = vsel %vm336, %v327, %v329
        %v343 = vsel %vm336, %v331, %v333
        %v344 = vsel %vm336, %v333, %v335
        %v353 = vadd.f32 %v242, %v337
        %v354 = vadd.f32 %v243, %v338
        %v355 = vadd.f32 %v244, %v339
        %v356 = vadd.f32 %v245, %v340
        %v357 = vadd.f32 %v246, %v341
        %v358 = vadd.f32 %v247, %v342
        %v359 = vadd.f32 %v248, %v343
        %v360 = vadd.f32 %v249, %v344
        %s361 = scalar_lea.vmem %s1, 32
        %v362 = vld [vmem:[%s361] sm:$0xf]
        %v363 = vld [vmem:[%s361 + $0x4] sm:$0xf]
        %v364 = vld [vmem:[%s361 + $0x8] sm:$0xf]
        %v365 = vld [vmem:[%s361 + $0xc] sm:$0xf]
        %v366 = vunpack.c.l.bf16 %v362
        %v367 = vunpack.c.l.bf16 %v363
        %v368 = vunpack.c.l.bf16 %v364
        %v369 = vunpack.c.l.bf16 %v365
        %371 = vset.pattern.permute.xlu0 0
        %372 = vperm.xlu0 %371, %v366
        %v373 = vpop.permute.xlu0 %372
        %376 = vset.pattern.permute.xlu0 0
        %377 = vperm.xlu0 %376, %v367
        %v378 = vpop.permute.xlu0 %377
        %381 = vset.pattern.permute.xlu0 0
        %382 = vperm.xlu0 %381, %v368
        %v383 = vpop.permute.xlu0 %382
        %386 = vset.pattern.permute.xlu0 0
        %387 = vperm.xlu0 %386, %v369
        %v388 = vpop.permute.xlu0 %387
        %v390 = vmul.f32 %v373, %v229
        %v391 = vmul.f32 %v373, %v233
        %v392 = vmul.f32 %v373, %v287
        %v393 = vmul.f32 %v378, %v229
        %v394 = vmul.f32 %v378, %v233
        %v395 = vmul.f32 %v378, %v287
        %v396 = vmul.f32 %v383, %v229
        %v397 = vmul.f32 %v383, %v233
        %v398 = vmul.f32 %v383, %v287
        %v399 = vmul.f32 %v388, %v229
        %v400 = vmul.f32 %v388, %v233
        %v401 = vmul.f32 %v388, %v287
        %414 = vrot.lane.b32.xlu0 %v390, 126
        %v415 = vpop.permute.xlu0 %414
        %416 = vrot.lane.b32.xlu0 %v391, 126
        %v417 = vpop.permute.xlu0 %416
        %418 = vrot.lane.b32.xlu0 %v392, 126
        %v419 = vpop.permute.xlu0 %418
        %420 = vrot.lane.b32.xlu0 %v393, 126
        %v421 = vpop.permute.xlu0 %420
        %422 = vrot.lane.b32.xlu0 %v394, 126
        %v423 = vpop.permute.xlu0 %422
        %424 = vrot.lane.b32.xlu0 %v395, 126
        %v425 = vpop.permute.xlu0 %424
        %426 = vrot.lane.b32.xlu0 %v396, 126
        %v427 = vpop.permute.xlu0 %426
        %428 = vrot.lane.b32.xlu0 %v397, 126
        %v429 = vpop.permute.xlu0 %428
        %430 = vrot.lane.b32.xlu0 %v398, 126
        %v431 = vpop.permute.xlu0 %430
        %432 = vrot.lane.b32.xlu0 %v399, 126
        %v433 = vpop.permute.xlu0 %432
        %434 = vrot.lane.b32.xlu0 %v400, 126
        %v435 = vpop.permute.xlu0 %434
        %436 = vrot.lane.b32.xlu0 %v401, 126
        %v437 = vpop.permute.xlu0 %436
        %vm438 = vcmask 1031168
        %v439 = vsel %vm438, %v415, %v417
        %v440 = vsel %vm438, %v417, %v419
        %v441 = vsel %vm438, %v421, %v423
        %v442 = vsel %vm438, %v423, %v425
        %v443 = vsel %vm438, %v427, %v429
        %v444 = vsel %vm438, %v429, %v431
        %v445 = vsel %vm438, %v433, %v435
        %v446 = vsel %vm438, %v435, %v437
        %v455 = vadd.f32 %v353, %v439
        %v456 = vadd.f32 %v354, %v440
        %v457 = vadd.f32 %v355, %v441
        %v458 = vadd.f32 %v356, %v442
        %v459 = vadd.f32 %v357, %v443
        %v460 = vadd.f32 %v358, %v444
        %v461 = vadd.f32 %v359, %v445
        %v462 = vadd.f32 %v360, %v446
        %s463 = scalar_lea.vmem %s1, 48
        %v464 = vld [vmem:[%s463] sm:$0xf]
        %v465 = vld [vmem:[%s463 + $0x4] sm:$0xf]
        %v466 = vld [vmem:[%s463 + $0x8] sm:$0xf]
        %v467 = vld [vmem:[%s463 + $0xc] sm:$0xf]
        %v468 = vunpack.c.l.bf16 %v464
        %v469 = vunpack.c.l.bf16 %v465
        %v470 = vunpack.c.l.bf16 %v466
        %v471 = vunpack.c.l.bf16 %v467
        %473 = vset.pattern.permute.xlu0 0
        %474 = vperm.xlu0 %473, %v468
        %v475 = vpop.permute.xlu0 %474
        %478 = vset.pattern.permute.xlu0 0
        %479 = vperm.xlu0 %478, %v469
        %v480 = vpop.permute.xlu0 %479
        %483 = vset.pattern.permute.xlu0 0
        %484 = vperm.xlu0 %483, %v470
        %v485 = vpop.permute.xlu0 %484
        %488 = vset.pattern.permute.xlu0 0
        %489 = vperm.xlu0 %488, %v471
        %v490 = vpop.permute.xlu0 %489
        %v492 = vmul.f32 %v475, %v229
        %v493 = vmul.f32 %v475, %v233
        %v494 = vmul.f32 %v475, %v287
        %v495 = vmul.f32 %v480, %v229
        %v496 = vmul.f32 %v480, %v233
        %v497 = vmul.f32 %v480, %v287
        %v498 = vmul.f32 %v485, %v229
        %v499 = vmul.f32 %v485, %v233
        %v500 = vmul.f32 %v485, %v287
        %v501 = vmul.f32 %v490, %v229
        %v502 = vmul.f32 %v490, %v233
        %v503 = vmul.f32 %v490, %v287
        %516 = vrot.lane.b32.xlu0 %v492, 125
        %v517 = vpop.permute.xlu0 %516
        %518 = vrot.lane.b32.xlu0 %v493, 125
        %v519 = vpop.permute.xlu0 %518
        %520 = vrot.lane.b32.xlu0 %v494, 125
        %v521 = vpop.permute.xlu0 %520
        %522 = vrot.lane.b32.xlu0 %v495, 125
        %v523 = vpop.permute.xlu0 %522
        %524 = vrot.lane.b32.xlu0 %v496, 125
        %v525 = vpop.permute.xlu0 %524
        %526 = vrot.lane.b32.xlu0 %v497, 125
        %v527 = vpop.permute.xlu0 %526
        %528 = vrot.lane.b32.xlu0 %v498, 125
        %v529 = vpop.permute.xlu0 %528
        %530 = vrot.lane.b32.xlu0 %v499, 125
        %v531 = vpop.permute.xlu0 %530
        %532 = vrot.lane.b32.xlu0 %v500, 125
        %v533 = vpop.permute.xlu0 %532
        %534 = vrot.lane.b32.xlu0 %v501, 125
        %v535 = vpop.permute.xlu0 %534
        %536 = vrot.lane.b32.xlu0 %v502, 125
        %v537 = vpop.permute.xlu0 %536
        %538 = vrot.lane.b32.xlu0 %v503, 125
        %v539 = vpop.permute.xlu0 %538
        %vm540 = vcmask 1022976
        %v541 = vsel %vm540, %v517, %v519
        %v542 = vsel %vm540, %v519, %v521
        %v543 = vsel %vm540, %v523, %v525
        %v544 = vsel %vm540, %v525, %v527
        %v545 = vsel %vm540, %v529, %v531
        %v546 = vsel %vm540, %v531, %v533
        %v547 = vsel %vm540, %v535, %v537
        %v548 = vsel %vm540, %v537, %v539
        %v557 = vadd.f32 %v455, %v541
        %v558 = vadd.f32 %v456, %v542
        %v559 = vadd.f32 %v457, %v543
        %v560 = vadd.f32 %v458, %v544
        %v561 = vadd.f32 %v459, %v545
        %v562 = vadd.f32 %v460, %v546
        %v563 = vadd.f32 %v461, %v547
        %v564 = vadd.f32 %v462, %v548
        %s565 = scalar_lea.vmem %s1, 64
        %v566 = vld [vmem:[%s565] sm:$0xf]
        %v567 = vld [vmem:[%s565 + $0x4] sm:$0xf]
        %v568 = vld [vmem:[%s565 + $0x8] sm:$0xf]
        %v569 = vld [vmem:[%s565 + $0xc] sm:$0xf]
        %v570 = vunpack.c.l.bf16 %v566
        %v571 = vunpack.c.l.bf16 %v567
        %v572 = vunpack.c.l.bf16 %v568
        %v573 = vunpack.c.l.bf16 %v569
        %575 = vset.pattern.permute.xlu0 0
        %576 = vperm.xlu0 %575, %v570
        %v577 = vpop.permute.xlu0 %576
        %580 = vset.pattern.permute.xlu0 0
        %581 = vperm.xlu0 %580, %v571
        %v582 = vpop.permute.xlu0 %581
        %585 = vset.pattern.permute.xlu0 0
        %586 = vperm.xlu0 %585, %v572
        %v587 = vpop.permute.xlu0 %586
        %590 = vset.pattern.permute.xlu0 0
        %591 = vperm.xlu0 %590, %v573
        %v592 = vpop.permute.xlu0 %591
        %v594 = vmul.f32 %v577, %v229
        %v595 = vmul.f32 %v577, %v233
        %v596 = vmul.f32 %v577, %v287
        %v597 = vmul.f32 %v582, %v229
        %v598 = vmul.f32 %v582, %v233
        %v599 = vmul.f32 %v582, %v287
        %v600 = vmul.f32 %v587, %v229
        %v601 = vmul.f32 %v587, %v233
        %v602 = vmul.f32 %v587, %v287
        %v603 = vmul.f32 %v592, %v229
        %v604 = vmul.f32 %v592, %v233
        %v605 = vmul.f32 %v592, %v287
        %618 = vrot.lane.b32.xlu0 %v594, 124
        %v619 = vpop.permute.xlu0 %618
        %620 = vrot.lane.b32.xlu0 %v595, 124
        %v621 = vpop.permute.xlu0 %620
        %622 = vrot.lane.b32.xlu0 %v596, 124
        %v623 = vpop.permute.xlu0 %622
        %624 = vrot.lane.b32.xlu0 %v597, 124
        %v625 = vpop.permute.xlu0 %624
        %626 = vrot.lane.b32.xlu0 %v598, 124
        %v627 = vpop.permute.xlu0 %626
        %628 = vrot.lane.b32.xlu0 %v599, 124
        %v629 = vpop.permute.xlu0 %628
        %630 = vrot.lane.b32.xlu0 %v600, 124
        %v631 = vpop.permute.xlu0 %630
        %632 = vrot.lane.b32.xlu0 %v601, 124
        %v633 = vpop.permute.xlu0 %632
        %634 = vrot.lane.b32.xlu0 %v602, 124
        %v635 = vpop.permute.xlu0 %634
        %636 = vrot.lane.b32.xlu0 %v603, 124
        %v637 = vpop.permute.xlu0 %636
        %638 = vrot.lane.b32.xlu0 %v604, 124
        %v639 = vpop.permute.xlu0 %638
        %640 = vrot.lane.b32.xlu0 %v605, 124
        %v641 = vpop.permute.xlu0 %640
        %vm642 = vcmask 1014784
        %v643 = vsel %vm642, %v619, %v621
        %v644 = vsel %vm642, %v621, %v623
        %v645 = vsel %vm642, %v625, %v627
        %v646 = vsel %vm642, %v627, %v629
        %v647 = vsel %vm642, %v631, %v633
        %v648 = vsel %vm642, %v633, %v635
        %v649 = vsel %vm642, %v637, %v639
        %v650 = vsel %vm642, %v639, %v641
        %v659 = vadd.f32 %v557, %v643
        %v660 = vadd.f32 %v558, %v644
        %v661 = vadd.f32 %v559, %v645
        %v662 = vadd.f32 %v560, %v646
        %v663 = vadd.f32 %v561, %v647
        %v664 = vadd.f32 %v562, %v648
        %v665 = vadd.f32 %v563, %v649
        %v666 = vadd.f32 %v564, %v650
        %s667 = scalar_lea.vmem %s1, 80
        %v668 = vld [vmem:[%s667] sm:$0xf]
        %v669 = vld [vmem:[%s667 + $0x4] sm:$0xf]
        %v670 = vld [vmem:[%s667 + $0x8] sm:$0xf]
        %v671 = vld [vmem:[%s667 + $0xc] sm:$0xf]
        %v672 = vunpack.c.l.bf16 %v668
        %v673 = vunpack.c.l.bf16 %v669
        %v674 = vunpack.c.l.bf16 %v670
        %v675 = vunpack.c.l.bf16 %v671
        %677 = vset.pattern.permute.xlu0 0
        %678 = vperm.xlu0 %677, %v672
        %v679 = vpop.permute.xlu0 %678
        %682 = vset.pattern.permute.xlu0 0
        %683 = vperm.xlu0 %682, %v673
        %v684 = vpop.permute.xlu0 %683
        %687 = vset.pattern.permute.xlu0 0
        %688 = vperm.xlu0 %687, %v674
        %v689 = vpop.permute.xlu0 %688
        %692 = vset.pattern.permute.xlu0 0
        %693 = vperm.xlu0 %692, %v675
        %v694 = vpop.permute.xlu0 %693
        %v696 = vmul.f32 %v679, %v229
        %v697 = vmul.f32 %v679, %v233
        %v698 = vmul.f32 %v679, %v287
        %v699 = vmul.f32 %v684, %v229
        %v700 = vmul.f32 %v684, %v233
        %v701 = vmul.f32 %v684, %v287
        %v702 = vmul.f32 %v689, %v229
        %v703 = vmul.f32 %v689, %v233
        %v704 = vmul.f32 %v689, %v287
        %v705 = vmul.f32 %v694, %v229
        %v706 = vmul.f32 %v694, %v233
        %v707 = vmul.f32 %v694, %v287
        %720 = vrot.lane.b32.xlu0 %v696, 123
        %v721 = vpop.permute.xlu0 %720
        %722 = vrot.lane.b32.xlu0 %v697, 123
        %v723 = vpop.permute.xlu0 %722
        %724 = vrot.lane.b32.xlu0 %v698, 123
        %v725 = vpop.permute.xlu0 %724
        %726 = vrot.lane.b32.xlu0 %v699, 123
        %v727 = vpop.permute.xlu0 %726
        %728 = vrot.lane.b32.xlu0 %v700, 123
        %v729 = vpop.permute.xlu0 %728
        %730 = vrot.lane.b32.xlu0 %v701, 123
        %v731 = vpop.permute.xlu0 %730
        %732 = vrot.lane.b32.xlu0 %v702, 123
        %v733 = vpop.permute.xlu0 %732
        %734 = vrot.lane.b32.xlu0 %v703, 123
        %v735 = vpop.permute.xlu0 %734
        %736 = vrot.lane.b32.xlu0 %v704, 123
        %v737 = vpop.permute.xlu0 %736
        %738 = vrot.lane.b32.xlu0 %v705, 123
        %v739 = vpop.permute.xlu0 %738
        %740 = vrot.lane.b32.xlu0 %v706, 123
        %v741 = vpop.permute.xlu0 %740
        %742 = vrot.lane.b32.xlu0 %v707, 123
        %v743 = vpop.permute.xlu0 %742
        %vm744 = vcmask 1006592
        %v745 = vsel %vm744, %v721, %v723
        %v746 = vsel %vm744, %v723, %v725
        %v747 = vsel %vm744, %v727, %v729
        %v748 = vsel %vm744, %v729, %v731
        %v749 = vsel %vm744, %v733, %v735
        %v750 = vsel %vm744, %v735, %v737
        %v751 = vsel %vm744, %v739, %v741
        %v752 = vsel %vm744, %v741, %v743
        %v761 = vadd.f32 %v659, %v745
        %v762 = vadd.f32 %v660, %v746
        %v763 = vadd.f32 %v661, %v747
        %v764 = vadd.f32 %v662, %v748
        %v765 = vadd.f32 %v663, %v749
        %v766 = vadd.f32 %v664, %v750
        %v767 = vadd.f32 %v665, %v751
        %v768 = vadd.f32 %v666, %v752
        %s769 = scalar_lea.vmem %s1, 96
        %v770 = vld [vmem:[%s769] sm:$0xf]
        %v771 = vld [vmem:[%s769 + $0x4] sm:$0xf]
        %v772 = vld [vmem:[%s769 + $0x8] sm:$0xf]
        %v773 = vld [vmem:[%s769 + $0xc] sm:$0xf]
        %v774 = vunpack.c.l.bf16 %v770
        %v775 = vunpack.c.l.bf16 %v771
        %v776 = vunpack.c.l.bf16 %v772
        %v777 = vunpack.c.l.bf16 %v773
        %779 = vset.pattern.permute.xlu0 0
        %780 = vperm.xlu0 %779, %v774
        %v781 = vpop.permute.xlu0 %780
        %784 = vset.pattern.permute.xlu0 0
        %785 = vperm.xlu0 %784, %v775
        %v786 = vpop.permute.xlu0 %785
        %789 = vset.pattern.permute.xlu0 0
        %790 = vperm.xlu0 %789, %v776
        %v791 = vpop.permute.xlu0 %790
        %794 = vset.pattern.permute.xlu0 0
        %795 = vperm.xlu0 %794, %v777
        %v796 = vpop.permute.xlu0 %795
        %v798 = vmul.f32 %v781, %v229
        %v799 = vmul.f32 %v781, %v233
        %v800 = vmul.f32 %v781, %v287
        %v801 = vmul.f32 %v786, %v229
        %v802 = vmul.f32 %v786, %v233
        %v803 = vmul.f32 %v786, %v287
        %v804 = vmul.f32 %v791, %v229
        %v805 = vmul.f32 %v791, %v233
        %v806 = vmul.f32 %v791, %v287
        %v807 = vmul.f32 %v796, %v229
        %v808 = vmul.f32 %v796, %v233
        %v809 = vmul.f32 %v796, %v287
        %822 = vrot.lane.b32.xlu0 %v798, 122
        %v823 = vpop.permute.xlu0 %822
        %824 = vrot.lane.b32.xlu0 %v799, 122
        %v825 = vpop.permute.xlu0 %824
        %826 = vrot.lane.b32.xlu0 %v800, 122
        %v827 = vpop.permute.xlu0 %826
        %828 = vrot.lane.b32.xlu0 %v801, 122
        %v829 = vpop.permute.xlu0 %828
        %830 = vrot.lane.b32.xlu0 %v802, 122
        %v831 = vpop.permute.xlu0 %830
        %832 = vrot.lane.b32.xlu0 %v803, 122
        %v833 = vpop.permute.xlu0 %832
        %834 = vrot.lane.b32.xlu0 %v804, 122
        %v835 = vpop.permute.xlu0 %834
        %836 = vrot.lane.b32.xlu0 %v805, 122
        %v837 = vpop.permute.xlu0 %836
        %838 = vrot.lane.b32.xlu0 %v806, 122
        %v839 = vpop.permute.xlu0 %838
        %840 = vrot.lane.b32.xlu0 %v807, 122
        %v841 = vpop.permute.xlu0 %840
        %842 = vrot.lane.b32.xlu0 %v808, 122
        %v843 = vpop.permute.xlu0 %842
        %844 = vrot.lane.b32.xlu0 %v809, 122
        %v845 = vpop.permute.xlu0 %844
        %vm846 = vcmask 998400
        %v847 = vsel %vm846, %v823, %v825
        %v848 = vsel %vm846, %v825, %v827
        %v849 = vsel %vm846, %v829, %v831
        %v850 = vsel %vm846, %v831, %v833
        %v851 = vsel %vm846, %v835, %v837
        %v852 = vsel %vm846, %v837, %v839
        %v853 = vsel %vm846, %v841, %v843
        %v854 = vsel %vm846, %v843, %v845
        %v863 = vadd.f32 %v761, %v847
        %v864 = vadd.f32 %v762, %v848
        %v865 = vadd.f32 %v763, %v849
        %v866 = vadd.f32 %v764, %v850
        %v867 = vadd.f32 %v765, %v851
        %v868 = vadd.f32 %v766, %v852
        %v869 = vadd.f32 %v767, %v853
        %v870 = vadd.f32 %v768, %v854
        %s871 = scalar_lea.vmem %s1, 112
        %v872 = vld [vmem:[%s871] sm:$0xf]
        %v873 = vld [vmem:[%s871 + $0x4] sm:$0xf]
        %v874 = vld [vmem:[%s871 + $0x8] sm:$0xf]
        %v875 = vld [vmem:[%s871 + $0xc] sm:$0xf]
        %v876 = vunpack.c.l.bf16 %v872
        %v877 = vunpack.c.l.bf16 %v873
        %v878 = vunpack.c.l.bf16 %v874
        %v879 = vunpack.c.l.bf16 %v875
        %881 = vset.pattern.permute.xlu0 0
        %882 = vperm.xlu0 %881, %v876
        %v883 = vpop.permute.xlu0 %882
        %886 = vset.pattern.permute.xlu0 0
        %887 = vperm.xlu0 %886, %v877
        %v888 = vpop.permute.xlu0 %887
        %891 = vset.pattern.permute.xlu0 0
        %892 = vperm.xlu0 %891, %v878
        %v893 = vpop.permute.xlu0 %892
        %896 = vset.pattern.permute.xlu0 0
        %897 = vperm.xlu0 %896, %v879
        %v898 = vpop.permute.xlu0 %897
        %v900 = vmul.f32 %v883, %v229
        %v901 = vmul.f32 %v883, %v233
        %v902 = vmul.f32 %v883, %v287
        %v903 = vmul.f32 %v888, %v229
        %v904 = vmul.f32 %v888, %v233
        %v905 = vmul.f32 %v888, %v287
        %v906 = vmul.f32 %v893, %v229
        %v907 = vmul.f32 %v893, %v233
        %v908 = vmul.f32 %v893, %v287
        %v909 = vmul.f32 %v898, %v229
        %v910 = vmul.f32 %v898, %v233
        %v911 = vmul.f32 %v898, %v287
        %924 = vrot.lane.b32.xlu0 %v900, 121
        %v925 = vpop.permute.xlu0 %924
        %926 = vrot.lane.b32.xlu0 %v901, 121
        %v927 = vpop.permute.xlu0 %926
        %928 = vrot.lane.b32.xlu0 %v902, 121
        %v929 = vpop.permute.xlu0 %928
        %930 = vrot.lane.b32.xlu0 %v903, 121
        %v931 = vpop.permute.xlu0 %930
        %932 = vrot.lane.b32.xlu0 %v904, 121
        %v933 = vpop.permute.xlu0 %932
        %934 = vrot.lane.b32.xlu0 %v905, 121
        %v935 = vpop.permute.xlu0 %934
        %936 = vrot.lane.b32.xlu0 %v906, 121
        %v937 = vpop.permute.xlu0 %936
        %938 = vrot.lane.b32.xlu0 %v907, 121
        %v939 = vpop.permute.xlu0 %938
        %940 = vrot.lane.b32.xlu0 %v908, 121
        %v941 = vpop.permute.xlu0 %940
        %942 = vrot.lane.b32.xlu0 %v909, 121
        %v943 = vpop.permute.xlu0 %942
        %944 = vrot.lane.b32.xlu0 %v910, 121
        %v945 = vpop.permute.xlu0 %944
        %946 = vrot.lane.b32.xlu0 %v911, 121
        %v947 = vpop.permute.xlu0 %946
        %vm948 = vcmask 990208
        %v949 = vsel %vm948, %v925, %v927
        %v950 = vsel %vm948, %v927, %v929
        %v951 = vsel %vm948, %v931, %v933
        %v952 = vsel %vm948, %v933, %v935
        %v953 = vsel %vm948, %v937, %v939
        %v954 = vsel %vm948, %v939, %v941
        %v955 = vsel %vm948, %v943, %v945
        %v956 = vsel %vm948, %v945, %v947
        %v965 = vadd.f32 %v863, %v949
        %v966 = vadd.f32 %v864, %v950
        %v967 = vadd.f32 %v865, %v951
        %v968 = vadd.f32 %v866, %v952
        %v969 = vadd.f32 %v867, %v953
        %v970 = vadd.f32 %v868, %v954
        %v971 = vadd.f32 %v869, %v955
        %v972 = vadd.f32 %v870, %v956
        %s973 = scalar_lea.vmem %s1, 128
        %v974 = vld [vmem:[%s973] sm:$0xf]
        %v975 = vld [vmem:[%s973 + $0x4] sm:$0xf]
        %v976 = vld [vmem:[%s973 + $0x8] sm:$0xf]
        %v977 = vld [vmem:[%s973 + $0xc] sm:$0xf]
        %v978 = vunpack.c.l.bf16 %v974
        %v979 = vunpack.c.l.bf16 %v975
        %v980 = vunpack.c.l.bf16 %v976
        %v981 = vunpack.c.l.bf16 %v977
        %983 = vset.pattern.permute.xlu0 0
        %984 = vperm.xlu0 %983, %v978
        %v985 = vpop.permute.xlu0 %984
        %988 = vset.pattern.permute.xlu0 0
        %989 = vperm.xlu0 %988, %v979
        %v990 = vpop.permute.xlu0 %989
        %993 = vset.pattern.permute.xlu0 0
        %994 = vperm.xlu0 %993, %v980
        %v995 = vpop.permute.xlu0 %994
        %998 = vset.pattern.permute.xlu0 0
        %999 = vperm.xlu0 %998, %v981
        %v1000 = vpop.permute.xlu0 %999
        %v1002 = vmul.f32 %v985, %v229
        %v1003 = vmul.f32 %v985, %v233
        %v1004 = vmul.f32 %v985, %v287
        %v1005 = vmul.f32 %v990, %v229
        %v1006 = vmul.f32 %v990, %v233
        %v1007 = vmul.f32 %v990, %v287
        %v1008 = vmul.f32 %v995, %v229
        %v1009 = vmul.f32 %v995, %v233
        %v1010 = vmul.f32 %v995, %v287
        %v1011 = vmul.f32 %v1000, %v229
        %v1012 = vmul.f32 %v1000, %v233
        %v1013 = vmul.f32 %v1000, %v287
        %1026 = vrot.lane.b32.xlu0 %v1002, 120
        %v1027 = vpop.permute.xlu0 %1026
        %1028 = vrot.lane.b32.xlu0 %v1003, 120
        %v1029 = vpop.permute.xlu0 %1028
        %1030 = vrot.lane.b32.xlu0 %v1004, 120
        %v1031 = vpop.permute.xlu0 %1030
        %1032 = vrot.lane.b32.xlu0 %v1005, 120
        %v1033 = vpop.permute.xlu0 %1032
        %1034 = vrot.lane.b32.xlu0 %v1006, 120
        %v1035 = vpop.permute.xlu0 %1034
        %1036 = vrot.lane.b32.xlu0 %v1007, 120
        %v1037 = vpop.permute.xlu0 %1036
        %1038 = vrot.lane.b32.xlu0 %v1008, 120
        %v1039 = vpop.permute.xlu0 %1038
        %1040 = vrot.lane.b32.xlu0 %v1009, 120
        %v1041 = vpop.permute.xlu0 %1040
        %1042 = vrot.lane.b32.xlu0 %v1010, 120
        %v1043 = vpop.permute.xlu0 %1042
        %1044 = vrot.lane.b32.xlu0 %v1011, 120
        %v1045 = vpop.permute.xlu0 %1044
        %1046 = vrot.lane.b32.xlu0 %v1012, 120
        %v1047 = vpop.permute.xlu0 %1046
        %1048 = vrot.lane.b32.xlu0 %v1013, 120
        %v1049 = vpop.permute.xlu0 %1048
        %vm1050 = vcmask 982016
        %v1051 = vsel %vm1050, %v1027, %v1029
        %v1052 = vsel %vm1050, %v1029, %v1031
        %v1053 = vsel %vm1050, %v1033, %v1035
        %v1054 = vsel %vm1050, %v1035, %v1037
        %v1055 = vsel %vm1050, %v1039, %v1041
        %v1056 = vsel %vm1050, %v1041, %v1043
        %v1057 = vsel %vm1050, %v1045, %v1047
        %v1058 = vsel %vm1050, %v1047, %v1049
        %v1067 = vadd.f32 %v965, %v1051
        %v1068 = vadd.f32 %v966, %v1052
        %v1069 = vadd.f32 %v967, %v1053
        %v1070 = vadd.f32 %v968, %v1054
        %v1071 = vadd.f32 %v969, %v1055
        %v1072 = vadd.f32 %v970, %v1056
        %v1073 = vadd.f32 %v971, %v1057
        %v1074 = vadd.f32 %v972, %v1058
        %s1075 = scalar_lea.vmem %s1, 144
        %v1076 = vld [vmem:[%s1075] sm:$0xf]
        %v1077 = vld [vmem:[%s1075 + $0x4] sm:$0xf]
        %v1078 = vld [vmem:[%s1075 + $0x8] sm:$0xf]
        %v1079 = vld [vmem:[%s1075 + $0xc] sm:$0xf]
        %v1080 = vunpack.c.l.bf16 %v1076
        %v1081 = vunpack.c.l.bf16 %v1077
        %v1082 = vunpack.c.l.bf16 %v1078
        %v1083 = vunpack.c.l.bf16 %v1079
        %1085 = vset.pattern.permute.xlu0 0
        %1086 = vperm.xlu0 %1085, %v1080
        %v1087 = vpop.permute.xlu0 %1086
        %1090 = vset.pattern.permute.xlu0 0
        %1091 = vperm.xlu0 %1090, %v1081
        %v1092 = vpop.permute.xlu0 %1091
        %1095 = vset.pattern.permute.xlu0 0
        %1096 = vperm.xlu0 %1095, %v1082
        %v1097 = vpop.permute.xlu0 %1096
        %1100 = vset.pattern.permute.xlu0 0
        %1101 = vperm.xlu0 %1100, %v1083
        %v1102 = vpop.permute.xlu0 %1101
        %v1104 = vmul.f32 %v1087, %v229
        %v1105 = vmul.f32 %v1087, %v233
        %v1106 = vmul.f32 %v1087, %v287
        %v1107 = vmul.f32 %v1092, %v229
        %v1108 = vmul.f32 %v1092, %v233
        %v1109 = vmul.f32 %v1092, %v287
        %v1110 = vmul.f32 %v1097, %v229
        %v1111 = vmul.f32 %v1097, %v233
        %v1112 = vmul.f32 %v1097, %v287
        %v1113 = vmul.f32 %v1102, %v229
        %v1114 = vmul.f32 %v1102, %v233
        %v1115 = vmul.f32 %v1102, %v287
        %1128 = vrot.lane.b32.xlu0 %v1104, 119
        %v1129 = vpop.permute.xlu0 %1128
        %1130 = vrot.lane.b32.xlu0 %v1105, 119
        %v1131 = vpop.permute.xlu0 %1130
        %1132 = vrot.lane.b32.xlu0 %v1106, 119
        %v1133 = vpop.permute.xlu0 %1132
        %1134 = vrot.lane.b32.xlu0 %v1107, 119
        %v1135 = vpop.permute.xlu0 %1134
        %1136 = vrot.lane.b32.xlu0 %v1108, 119
        %v1137 = vpop.permute.xlu0 %1136
        %1138 = vrot.lane.b32.xlu0 %v1109, 119
        %v1139 = vpop.permute.xlu0 %1138
        %1140 = vrot.lane.b32.xlu0 %v1110, 119
        %v1141 = vpop.permute.xlu0 %1140
        %1142 = vrot.lane.b32.xlu0 %v1111, 119
        %v1143 = vpop.permute.xlu0 %1142
        %1144 = vrot.lane.b32.xlu0 %v1112, 119
        %v1145 = vpop.permute.xlu0 %1144
        %1146 = vrot.lane.b32.xlu0 %v1113, 119
        %v1147 = vpop.permute.xlu0 %1146
        %1148 = vrot.lane.b32.xlu0 %v1114, 119
        %v1149 = vpop.permute.xlu0 %1148
        %1150 = vrot.lane.b32.xlu0 %v1115, 119
        %v1151 = vpop.permute.xlu0 %1150
        %vm1152 = vcmask 973824
        %v1153 = vsel %vm1152, %v1129, %v1131
        %v1154 = vsel %vm1152, %v1131, %v1133
        %v1155 = vsel %vm1152, %v1135, %v1137
        %v1156 = vsel %vm1152, %v1137, %v1139
        %v1157 = vsel %vm1152, %v1141, %v1143
        %v1158 = vsel %vm1152, %v1143, %v1145
        %v1159 = vsel %vm1152, %v1147, %v1149
        %v1160 = vsel %vm1152, %v1149, %v1151
        %v1169 = vadd.f32 %v1067, %v1153
        %v1170 = vadd.f32 %v1068, %v1154
        %v1171 = vadd.f32 %v1069, %v1155
        %v1172 = vadd.f32 %v1070, %v1156
        %v1173 = vadd.f32 %v1071, %v1157
        %v1174 = vadd.f32 %v1072, %v1158
        %v1175 = vadd.f32 %v1073, %v1159
        %v1176 = vadd.f32 %v1074, %v1160
        %s1177 = scalar_lea.vmem %s1, 160
        %v1178 = vld [vmem:[%s1177] sm:$0xf]
        %v1179 = vld [vmem:[%s1177 + $0x4] sm:$0xf]
        %v1180 = vld [vmem:[%s1177 + $0x8] sm:$0xf]
        %v1181 = vld [vmem:[%s1177 + $0xc] sm:$0xf]
        %v1182 = vunpack.c.l.bf16 %v1178
        %v1183 = vunpack.c.l.bf16 %v1179
        %v1184 = vunpack.c.l.bf16 %v1180
        %v1185 = vunpack.c.l.bf16 %v1181
        %1187 = vset.pattern.permute.xlu0 0
        %1188 = vperm.xlu0 %1187, %v1182
        %v1189 = vpop.permute.xlu0 %1188
        %1192 = vset.pattern.permute.xlu0 0
        %1193 = vperm.xlu0 %1192, %v1183
        %v1194 = vpop.permute.xlu0 %1193
        %1197 = vset.pattern.permute.xlu0 0
        %1198 = vperm.xlu0 %1197, %v1184
        %v1199 = vpop.permute.xlu0 %1198
        %1202 = vset.pattern.permute.xlu0 0
        %1203 = vperm.xlu0 %1202, %v1185
        %v1204 = vpop.permute.xlu0 %1203
        %v1206 = vmul.f32 %v1189, %v229
        %v1207 = vmul.f32 %v1189, %v233
        %v1208 = vmul.f32 %v1189, %v287
        %v1209 = vmul.f32 %v1194, %v229
        %v1210 = vmul.f32 %v1194, %v233
        %v1211 = vmul.f32 %v1194, %v287
        %v1212 = vmul.f32 %v1199, %v229
        %v1213 = vmul.f32 %v1199, %v233
        %v1214 = vmul.f32 %v1199, %v287
        %v1215 = vmul.f32 %v1204, %v229
        %v1216 = vmul.f32 %v1204, %v233
        %v1217 = vmul.f32 %v1204, %v287
        %1230 = vrot.lane.b32.xlu0 %v1206, 118
        %v1231 = vpop.permute.xlu0 %1230
        %1232 = vrot.lane.b32.xlu0 %v1207, 118
        %v1233 = vpop.permute.xlu0 %1232
        %1234 = vrot.lane.b32.xlu0 %v1208, 118
        %v1235 = vpop.permute.xlu0 %1234
        %1236 = vrot.lane.b32.xlu0 %v1209, 118
        %v1237 = vpop.permute.xlu0 %1236
        %1238 = vrot.lane.b32.xlu0 %v1210, 118
        %v1239 = vpop.permute.xlu0 %1238
        %1240 = vrot.lane.b32.xlu0 %v1211, 118
        %v1241 = vpop.permute.xlu0 %1240
        %1242 = vrot.lane.b32.xlu0 %v1212, 118
        %v1243 = vpop.permute.xlu0 %1242
        %1244 = vrot.lane.b32.xlu0 %v1213, 118
        %v1245 = vpop.permute.xlu0 %1244
        %1246 = vrot.lane.b32.xlu0 %v1214, 118
        %v1247 = vpop.permute.xlu0 %1246
        %1248 = vrot.lane.b32.xlu0 %v1215, 118
        %v1249 = vpop.permute.xlu0 %1248
        %1250 = vrot.lane.b32.xlu0 %v1216, 118
        %v1251 = vpop.permute.xlu0 %1250
        %1252 = vrot.lane.b32.xlu0 %v1217, 118
        %v1253 = vpop.permute.xlu0 %1252
        %vm1254 = vcmask 965632
        %v1255 = vsel %vm1254, %v1231, %v1233
        %v1256 = vsel %vm1254, %v1233, %v1235
        %v1257 = vsel %vm1254, %v1237, %v1239
        %v1258 = vsel %vm1254, %v1239, %v1241
        %v1259 = vsel %vm1254, %v1243, %v1245
        %v1260 = vsel %vm1254, %v1245, %v1247
        %v1261 = vsel %vm1254, %v1249, %v1251
        %v1262 = vsel %vm1254, %v1251, %v1253
        %v1271 = vadd.f32 %v1169, %v1255
        %v1272 = vadd.f32 %v1170, %v1256
        %v1273 = vadd.f32 %v1171, %v1257
        %v1274 = vadd.f32 %v1172, %v1258
        %v1275 = vadd.f32 %v1173, %v1259
        %v1276 = vadd.f32 %v1174, %v1260
        %v1277 = vadd.f32 %v1175, %v1261
        %v1278 = vadd.f32 %v1176, %v1262
        %s1279 = scalar_lea.vmem %s1, 176
        %v1280 = vld [vmem:[%s1279] sm:$0xf]
        %v1281 = vld [vmem:[%s1279 + $0x4] sm:$0xf]
        %v1282 = vld [vmem:[%s1279 + $0x8] sm:$0xf]
        %v1283 = vld [vmem:[%s1279 + $0xc] sm:$0xf]
        %v1284 = vunpack.c.l.bf16 %v1280
        %v1285 = vunpack.c.l.bf16 %v1281
        %v1286 = vunpack.c.l.bf16 %v1282
        %v1287 = vunpack.c.l.bf16 %v1283
        %1289 = vset.pattern.permute.xlu0 0
        %1290 = vperm.xlu0 %1289, %v1284
        %v1291 = vpop.permute.xlu0 %1290
        %1294 = vset.pattern.permute.xlu0 0
        %1295 = vperm.xlu0 %1294, %v1285
        %v1296 = vpop.permute.xlu0 %1295
        %1299 = vset.pattern.permute.xlu0 0
        %1300 = vperm.xlu0 %1299, %v1286
        %v1301 = vpop.permute.xlu0 %1300
        %1304 = vset.pattern.permute.xlu0 0
        %1305 = vperm.xlu0 %1304, %v1287
        %v1306 = vpop.permute.xlu0 %1305
        %v1308 = vmul.f32 %v1291, %v229
        %v1309 = vmul.f32 %v1291, %v233
        %v1310 = vmul.f32 %v1291, %v287
        %v1311 = vmul.f32 %v1296, %v229
        %v1312 = vmul.f32 %v1296, %v233
        %v1313 = vmul.f32 %v1296, %v287
        %v1314 = vmul.f32 %v1301, %v229
        %v1315 = vmul.f32 %v1301, %v233
        %v1316 = vmul.f32 %v1301, %v287
        %v1317 = vmul.f32 %v1306, %v229
        %v1318 = vmul.f32 %v1306, %v233
        %v1319 = vmul.f32 %v1306, %v287
        %1332 = vrot.lane.b32.xlu0 %v1308, 117
        %v1333 = vpop.permute.xlu0 %1332
        %1334 = vrot.lane.b32.xlu0 %v1309, 117
        %v1335 = vpop.permute.xlu0 %1334
        %1336 = vrot.lane.b32.xlu0 %v1310, 117
        %v1337 = vpop.permute.xlu0 %1336
        %1338 = vrot.lane.b32.xlu0 %v1311, 117
        %v1339 = vpop.permute.xlu0 %1338
        %1340 = vrot.lane.b32.xlu0 %v1312, 117
        %v1341 = vpop.permute.xlu0 %1340
        %1342 = vrot.lane.b32.xlu0 %v1313, 117
        %v1343 = vpop.permute.xlu0 %1342
        %1344 = vrot.lane.b32.xlu0 %v1314, 117
        %v1345 = vpop.permute.xlu0 %1344
        %1346 = vrot.lane.b32.xlu0 %v1315, 117
        %v1347 = vpop.permute.xlu0 %1346
        %1348 = vrot.lane.b32.xlu0 %v1316, 117
        %v1349 = vpop.permute.xlu0 %1348
        %1350 = vrot.lane.b32.xlu0 %v1317, 117
        %v1351 = vpop.permute.xlu0 %1350
        %1352 = vrot.lane.b32.xlu0 %v1318, 117
        %v1353 = vpop.permute.xlu0 %1352
        %1354 = vrot.lane.b32.xlu0 %v1319, 117
        %v1355 = vpop.permute.xlu0 %1354
        %vm1356 = vcmask 957440
        %v1357 = vsel %vm1356, %v1333, %v1335
        %v1358 = vsel %vm1356, %v1335, %v1337
        %v1359 = vsel %vm1356, %v1339, %v1341
        %v1360 = vsel %vm1356, %v1341, %v1343
        %v1361 = vsel %vm1356, %v1345, %v1347
        %v1362 = vsel %vm1356, %v1347, %v1349
        %v1363 = vsel %vm1356, %v1351, %v1353
        %v1364 = vsel %vm1356, %v1353, %v1355
        %v1373 = vadd.f32 %v1271, %v1357
        %v1374 = vadd.f32 %v1272, %v1358
        %v1375 = vadd.f32 %v1273, %v1359
        %v1376 = vadd.f32 %v1274, %v1360
        %v1377 = vadd.f32 %v1275, %v1361
        %v1378 = vadd.f32 %v1276, %v1362
        %v1379 = vadd.f32 %v1277, %v1363
        %v1380 = vadd.f32 %v1278, %v1364
        %s1381 = scalar_lea.vmem %s1, 192
        %v1382 = vld [vmem:[%s1381] sm:$0xf]
        %v1383 = vld [vmem:[%s1381 + $0x4] sm:$0xf]
        %v1384 = vld [vmem:[%s1381 + $0x8] sm:$0xf]
        %v1385 = vld [vmem:[%s1381 + $0xc] sm:$0xf]
        %v1386 = vunpack.c.l.bf16 %v1382
        %v1387 = vunpack.c.l.bf16 %v1383
        %v1388 = vunpack.c.l.bf16 %v1384
        %v1389 = vunpack.c.l.bf16 %v1385
        %1391 = vset.pattern.permute.xlu0 0
        %1392 = vperm.xlu0 %1391, %v1386
        %v1393 = vpop.permute.xlu0 %1392
        %1396 = vset.pattern.permute.xlu0 0
        %1397 = vperm.xlu0 %1396, %v1387
        %v1398 = vpop.permute.xlu0 %1397
        %1401 = vset.pattern.permute.xlu0 0
        %1402 = vperm.xlu0 %1401, %v1388
        %v1403 = vpop.permute.xlu0 %1402
        %1406 = vset.pattern.permute.xlu0 0
        %1407 = vperm.xlu0 %1406, %v1389
        %v1408 = vpop.permute.xlu0 %1407
        %v1410 = vmul.f32 %v1393, %v229
        %v1411 = vmul.f32 %v1393, %v233
        %v1412 = vmul.f32 %v1393, %v287
        %v1413 = vmul.f32 %v1398, %v229
        %v1414 = vmul.f32 %v1398, %v233
        %v1415 = vmul.f32 %v1398, %v287
        %v1416 = vmul.f32 %v1403, %v229
        %v1417 = vmul.f32 %v1403, %v233
        %v1418 = vmul.f32 %v1403, %v287
        %v1419 = vmul.f32 %v1408, %v229
        %v1420 = vmul.f32 %v1408, %v233
        %v1421 = vmul.f32 %v1408, %v287
        %1434 = vrot.lane.b32.xlu0 %v1410, 116
        %v1435 = vpop.permute.xlu0 %1434
        %1436 = vrot.lane.b32.xlu0 %v1411, 116
        %v1437 = vpop.permute.xlu0 %1436
        %1438 = vrot.lane.b32.xlu0 %v1412, 116
        %v1439 = vpop.permute.xlu0 %1438
        %1440 = vrot.lane.b32.xlu0 %v1413, 116
        %v1441 = vpop.permute.xlu0 %1440
        %1442 = vrot.lane.b32.xlu0 %v1414, 116
        %v1443 = vpop.permute.xlu0 %1442
        %1444 = vrot.lane.b32.xlu0 %v1415, 116
        %v1445 = vpop.permute.xlu0 %1444
        %1446 = vrot.lane.b32.xlu0 %v1416, 116
        %v1447 = vpop.permute.xlu0 %1446
        %1448 = vrot.lane.b32.xlu0 %v1417, 116
        %v1449 = vpop.permute.xlu0 %1448
        %1450 = vrot.lane.b32.xlu0 %v1418, 116
        %v1451 = vpop.permute.xlu0 %1450
        %1452 = vrot.lane.b32.xlu0 %v1419, 116
        %v1453 = vpop.permute.xlu0 %1452
        %1454 = vrot.lane.b32.xlu0 %v1420, 116
        %v1455 = vpop.permute.xlu0 %1454
        %1456 = vrot.lane.b32.xlu0 %v1421, 116
        %v1457 = vpop.permute.xlu0 %1456
        %vm1458 = vcmask 949248
        %v1459 = vsel %vm1458, %v1435, %v1437
        %v1460 = vsel %vm1458, %v1437, %v1439
        %v1461 = vsel %vm1458, %v1441, %v1443
        %v1462 = vsel %vm1458, %v1443, %v1445
        %v1463 = vsel %vm1458, %v1447, %v1449
        %v1464 = vsel %vm1458, %v1449, %v1451
        %v1465 = vsel %vm1458, %v1453, %v1455
        %v1466 = vsel %vm1458, %v1455, %v1457
        %v1475 = vadd.f32 %v1373, %v1459
        %v1476 = vadd.f32 %v1374, %v1460
        %v1477 = vadd.f32 %v1375, %v1461
        %v1478 = vadd.f32 %v1376, %v1462
        %v1479 = vadd.f32 %v1377, %v1463
        %v1480 = vadd.f32 %v1378, %v1464
        %v1481 = vadd.f32 %v1379, %v1465
        %v1482 = vadd.f32 %v1380, %v1466
        %s1483 = scalar_lea.vmem %s1, 208
        %v1484 = vld [vmem:[%s1483] sm:$0xf]
        %v1485 = vld [vmem:[%s1483 + $0x4] sm:$0xf]
        %v1486 = vld [vmem:[%s1483 + $0x8] sm:$0xf]
        %v1487 = vld [vmem:[%s1483 + $0xc] sm:$0xf]
        %v1488 = vunpack.c.l.bf16 %v1484
        %v1489 = vunpack.c.l.bf16 %v1485
        %v1490 = vunpack.c.l.bf16 %v1486
        %v1491 = vunpack.c.l.bf16 %v1487
        %1493 = vset.pattern.permute.xlu0 0
        %1494 = vperm.xlu0 %1493, %v1488
        %v1495 = vpop.permute.xlu0 %1494
        %1498 = vset.pattern.permute.xlu0 0
        %1499 = vperm.xlu0 %1498, %v1489
        %v1500 = vpop.permute.xlu0 %1499
        %1503 = vset.pattern.permute.xlu0 0
        %1504 = vperm.xlu0 %1503, %v1490
        %v1505 = vpop.permute.xlu0 %1504
        %1508 = vset.pattern.permute.xlu0 0
        %1509 = vperm.xlu0 %1508, %v1491
        %v1510 = vpop.permute.xlu0 %1509
        %v1512 = vmul.f32 %v1495, %v229
        %v1513 = vmul.f32 %v1495, %v233
        %v1514 = vmul.f32 %v1495, %v287
        %v1515 = vmul.f32 %v1500, %v229
        %v1516 = vmul.f32 %v1500, %v233
        %v1517 = vmul.f32 %v1500, %v287
        %v1518 = vmul.f32 %v1505, %v229
        %v1519 = vmul.f32 %v1505, %v233
        %v1520 = vmul.f32 %v1505, %v287
        %v1521 = vmul.f32 %v1510, %v229
        %v1522 = vmul.f32 %v1510, %v233
        %v1523 = vmul.f32 %v1510, %v287
        %1536 = vrot.lane.b32.xlu0 %v1512, 115
        %v1537 = vpop.permute.xlu0 %1536
        %1538 = vrot.lane.b32.xlu0 %v1513, 115
        %v1539 = vpop.permute.xlu0 %1538
        %1540 = vrot.lane.b32.xlu0 %v1514, 115
        %v1541 = vpop.permute.xlu0 %1540
        %1542 = vrot.lane.b32.xlu0 %v1515, 115
        %v1543 = vpop.permute.xlu0 %1542
        %1544 = vrot.lane.b32.xlu0 %v1516, 115
        %v1545 = vpop.permute.xlu0 %1544
        %1546 = vrot.lane.b32.xlu0 %v1517, 115
        %v1547 = vpop.permute.xlu0 %1546
        %1548 = vrot.lane.b32.xlu0 %v1518, 115
        %v1549 = vpop.permute.xlu0 %1548
        %1550 = vrot.lane.b32.xlu0 %v1519, 115
        %v1551 = vpop.permute.xlu0 %1550
        %1552 = vrot.lane.b32.xlu0 %v1520, 115
        %v1553 = vpop.permute.xlu0 %1552
        %1554 = vrot.lane.b32.xlu0 %v1521, 115
        %v1555 = vpop.permute.xlu0 %1554
        %1556 = vrot.lane.b32.xlu0 %v1522, 115
        %v1557 = vpop.permute.xlu0 %1556
        %1558 = vrot.lane.b32.xlu0 %v1523, 115
        %v1559 = vpop.permute.xlu0 %1558
        %vm1560 = vcmask 941056
        %v1561 = vsel %vm1560, %v1537, %v1539
        %v1562 = vsel %vm1560, %v1539, %v1541
        %v1563 = vsel %vm1560, %v1543, %v1545
        %v1564 = vsel %vm1560, %v1545, %v1547
        %v1565 = vsel %vm1560, %v1549, %v1551
        %v1566 = vsel %vm1560, %v1551, %v1553
        %v1567 = vsel %vm1560, %v1555, %v1557
        %v1568 = vsel %vm1560, %v1557, %v1559
        %v1577 = vadd.f32 %v1475, %v1561
        %v1578 = vadd.f32 %v1476, %v1562
        %v1579 = vadd.f32 %v1477, %v1563
        %v1580 = vadd.f32 %v1478, %v1564
        %v1581 = vadd.f32 %v1479, %v1565
        %v1582 = vadd.f32 %v1480, %v1566
        %v1583 = vadd.f32 %v1481, %v1567
        %v1584 = vadd.f32 %v1482, %v1568
        %s1585 = scalar_lea.vmem %s1, 224
        %v1586 = vld [vmem:[%s1585] sm:$0xf]
        %v1587 = vld [vmem:[%s1585 + $0x4] sm:$0xf]
        %v1588 = vld [vmem:[%s1585 + $0x8] sm:$0xf]
        %v1589 = vld [vmem:[%s1585 + $0xc] sm:$0xf]
        %v1590 = vunpack.c.l.bf16 %v1586
        %v1591 = vunpack.c.l.bf16 %v1587
        %v1592 = vunpack.c.l.bf16 %v1588
        %v1593 = vunpack.c.l.bf16 %v1589
        %1595 = vset.pattern.permute.xlu0 0
        %1596 = vperm.xlu0 %1595, %v1590
        %v1597 = vpop.permute.xlu0 %1596
        %1600 = vset.pattern.permute.xlu0 0
        %1601 = vperm.xlu0 %1600, %v1591
        %v1602 = vpop.permute.xlu0 %1601
        %1605 = vset.pattern.permute.xlu0 0
        %1606 = vperm.xlu0 %1605, %v1592
        %v1607 = vpop.permute.xlu0 %1606
        %1610 = vset.pattern.permute.xlu0 0
        %1611 = vperm.xlu0 %1610, %v1593
        %v1612 = vpop.permute.xlu0 %1611
        %v1614 = vmul.f32 %v1597, %v229
        %v1615 = vmul.f32 %v1597, %v233
        %v1616 = vmul.f32 %v1597, %v287
        %v1617 = vmul.f32 %v1602, %v229
        %v1618 = vmul.f32 %v1602, %v233
        %v1619 = vmul.f32 %v1602, %v287
        %v1620 = vmul.f32 %v1607, %v229
        %v1621 = vmul.f32 %v1607, %v233
        %v1622 = vmul.f32 %v1607, %v287
        %v1623 = vmul.f32 %v1612, %v229
        %v1624 = vmul.f32 %v1612, %v233
        %v1625 = vmul.f32 %v1612, %v287
        %1638 = vrot.lane.b32.xlu0 %v1614, 114
        %v1639 = vpop.permute.xlu0 %1638
        %1640 = vrot.lane.b32.xlu0 %v1615, 114
        %v1641 = vpop.permute.xlu0 %1640
        %1642 = vrot.lane.b32.xlu0 %v1616, 114
        %v1643 = vpop.permute.xlu0 %1642
        %1644 = vrot.lane.b32.xlu0 %v1617, 114
        %v1645 = vpop.permute.xlu0 %1644
        %1646 = vrot.lane.b32.xlu0 %v1618, 114
        %v1647 = vpop.permute.xlu0 %1646
        %1648 = vrot.lane.b32.xlu0 %v1619, 114
        %v1649 = vpop.permute.xlu0 %1648
        %1650 = vrot.lane.b32.xlu0 %v1620, 114
        %v1651 = vpop.permute.xlu0 %1650
        %1652 = vrot.lane.b32.xlu0 %v1621, 114
        %v1653 = vpop.permute.xlu0 %1652
        %1654 = vrot.lane.b32.xlu0 %v1622, 114
        %v1655 = vpop.permute.xlu0 %1654
        %1656 = vrot.lane.b32.xlu0 %v1623, 114
        %v1657 = vpop.permute.xlu0 %1656
        %1658 = vrot.lane.b32.xlu0 %v1624, 114
        %v1659 = vpop.permute.xlu0 %1658
        %1660 = vrot.lane.b32.xlu0 %v1625, 114
        %v1661 = vpop.permute.xlu0 %1660
        %vm1662 = vcmask 932864
        %v1663 = vsel %vm1662, %v1639, %v1641
        %v1664 = vsel %vm1662, %v1641, %v1643
        %v1665 = vsel %vm1662, %v1645, %v1647
        %v1666 = vsel %vm1662, %v1647, %v1649
        %v1667 = vsel %vm1662, %v1651, %v1653
        %v1668 = vsel %vm1662, %v1653, %v1655
        %v1669 = vsel %vm1662, %v1657, %v1659
        %v1670 = vsel %vm1662, %v1659, %v1661
        %v1679 = vadd.f32 %v1577, %v1663
        %v1680 = vadd.f32 %v1578, %v1664
        %v1681 = vadd.f32 %v1579, %v1665
        %v1682 = vadd.f32 %v1580, %v1666
        %v1683 = vadd.f32 %v1581, %v1667
        %v1684 = vadd.f32 %v1582, %v1668
        %v1685 = vadd.f32 %v1583, %v1669
        %v1686 = vadd.f32 %v1584, %v1670
        %v1687 = vld [vmem:[%s2] sm:$0xff]
        %v1688 = vld [vmem:[%s2 + $0x8] sm:$0xff]
        %v1689 = vld [vmem:[%s2 + $0x10] sm:$0xff]
        %v1690 = vld [vmem:[%s2 + $0x18] sm:$0xff]
        %1692 = vset.pattern.permute.xlu0 0
        %1693 = vperm.xlu0 %1692, %v1687
        %v1694 = vpop.permute.xlu0 %1693
        %1697 = vset.pattern.permute.xlu0 0
        %1698 = vperm.xlu0 %1697, %v1688
        %v1699 = vpop.permute.xlu0 %1698
        %1702 = vset.pattern.permute.xlu0 0
        %1703 = vperm.xlu0 %1702, %v1689
        %v1704 = vpop.permute.xlu0 %1703
        %1707 = vset.pattern.permute.xlu0 0
        %1708 = vperm.xlu0 %1707, %v1690
        %v1709 = vpop.permute.xlu0 %1708
        %v1711 = vadd.f32 %v1679, %v1694
        %v1712 = vadd.f32 %v1680, %v1694
        %v1713 = vadd.f32 %v1681, %v1699
        %v1714 = vadd.f32 %v1682, %v1699
        %v1715 = vadd.f32 %v1683, %v1704
        %v1716 = vadd.f32 %v1684, %v1704
        %v1717 = vadd.f32 %v1685, %v1709
        %v1718 = vadd.f32 %v1686, %v1709
        %vm1719 = vcmp.ge.f32.partialorder %v1711, 0.0
        %vm1720 = vcmp.ge.f32.partialorder %v1712, 0.0
        %vm1721 = vcmp.ge.f32.partialorder %v1713, 0.0
        %vm1722 = vcmp.ge.f32.partialorder %v1714, 0.0
        %vm1723 = vcmp.ge.f32.partialorder %v1715, 0.0
        %vm1724 = vcmp.ge.f32.partialorder %v1716, 0.0
        %vm1725 = vcmp.ge.f32.partialorder %v1717, 0.0
        %vm1726 = vcmp.ge.f32.partialorder %v1718, 0.0
        %v1727 = vmul.f32 %v1711, 0.2
        %v1728 = vmul.f32 %v1712, 0.2
        %v1729 = vmul.f32 %v1713, 0.2
        %v1730 = vmul.f32 %v1714, 0.2
        %v1731 = vmul.f32 %v1715, 0.2
        %v1732 = vmul.f32 %v1716, 0.2
        %v1733 = vmul.f32 %v1717, 0.2
        %v1734 = vmul.f32 %v1718, 0.2
        %v1735 = vsel %vm1719, %v1711, %v1727
        %v1736 = vsel %vm1720, %v1712, %v1728
        %v1737 = vsel %vm1721, %v1713, %v1729
        %v1738 = vsel %vm1722, %v1714, %v1730
        %v1739 = vsel %vm1723, %v1715, %v1731
        %v1740 = vsel %vm1724, %v1716, %v1732
        %v1741 = vsel %vm1725, %v1717, %v1733
        %v1742 = vsel %vm1726, %v1718, %v1734
        %1743 = vst [vmem:[%s175] sm:$0xff] %v1735
        %1744 = vst [vmem:[%s175 + $0x8] sm:$0xff] %v1736
        %1745 = vst [vmem:[%s175 + $0x10] sm:$0xff] %v1737
        %1746 = vst [vmem:[%s175 + $0x18] sm:$0xff] %v1738
        %1747 = vst [vmem:[%s175 + $0x20] sm:$0xff] %v1739
        %1748 = vst [vmem:[%s175 + $0x28] sm:$0xff] %v1740
        %1749 = vst [vmem:[%s175 + $0x30] sm:$0xff] %v1741
        %1750 = vst [vmem:[%s175 + $0x38] sm:$0xff] %v1742
        %s1751 = sand.u32 %s107, 1
        %s1752 = scalar_lea.sflag [#allocation3], %s1751
        %s1753 = sand.u32 %s107, 1
        %s1754 = smul.addr %s1753, 64
        %s1755 = scalar_lea.vmem [#allocation2], %s1754
        // Predicated region
        $region33: #{tpu_custom_call.1} parent=31 // pred_check
          %p1756 = pneg %p117
        $region34: #{tpu_custom_call.1} parent=31 // pred_check_branch
          %1758 = sbr.rel (%p1756) target = $region36
        $region35: #{tpu_custom_call.1} parent=31 // pred_region
          %s1759 = smul.u32 2, %s22
          %s1761 = ssub.s32 1024, 1024
          %1762 = vsyncadd %s1752, %s1761
          %s1763 = smul.addr %s21, 16
          %s1764 = sadd.s32 %s1759, %s1763
          %s1765 = smul.addr %s1764, 128
          %s1766 = scalar_lea.hbm %s3, %s1765
          %s1767 = sshll.u32 %s1755, 4
          %s1768 = int_to_ptr.vmem [resolvable:$true] %s1767
          %1773 = dma.vmem_to_hbm [thread:$0]  %s1768, 1024, %s1766, %s1752, 256, 512, 16
        $region36: #{tpu_custom_call.1} parent=31 // pred_fallthru
          _
      $region32: #{tpu_custom_call.1} parent=5 // pred_fallthru
        _
      %p1774 = scmp.le.s32.totalorder 2, %s12
      // Predicated region
      $region37: #{tpu_custom_call.1} parent=5 // pred_check
        %p1775 = pneg %p1774
      $region38: #{tpu_custom_call.1} parent=5 // pred_check_branch
        %1777 = sbr.rel (%p1775) target = $region40
      $region39: #{tpu_custom_call.1} parent=5 // pred_region
        %s1778 = ssub.s32 %s12, 2
        // Predicated region
        $region41: #{tpu_custom_call.1} parent=39 // pred_check
          %p1779 = pneg %p123
        $region42: #{tpu_custom_call.1} parent=39 // pred_check_branch
          %1781 = sbr.rel (%p1779) target = $region44
        $region43: #{tpu_custom_call.1} parent=39 // pred_region
          %s1782 = sand.u32 %s108, 1
          %s1783 = scalar_lea.sflag [#allocation3], %s1782
          %s1784 = sand.u32 %s108, 1
          %s1785 = smul.addr %s1784, 64
          %s1786 = scalar_lea.vmem [#allocation2], %s1785
          %1787 = dma.done %s1783, 1024
        $region44: #{tpu_custom_call.1} parent=39 // pred_fallthru
          _
      $region40: #{tpu_custom_call.1} parent=5 // pred_fallthru
        _
    $region6: #{tpu_custom_call.1} parent=1 // loop_footer
      %s16 = sadd.s32 1, %s12
    $region7: #{tpu_custom_call.1} parent=1 // loop_footer_branch
      %11 = sbr.rel target = $region3
    $region8: #{tpu_custom_call.1} parent=1 // loop_exit
      _
    %1788 = vsyncpa [#allocation3], 1
    %s1789 = scalar_lea.sflag [#allocation3], 1
    %1790 = vsyncpa %s1789, 1

</llo_original>
